<compile_context>
chip_gen: v5e
topology: v5e:2x2
jax: 0.10.0
libtpu: 0.0.40
codegen_flags: <defaults>
</compile_context>

<pallas_src>
import functools

import jax
import jax.numpy as jnp
from jax import lax
from jax.experimental import pallas as pl
from jax.experimental.pallas import tpu as pltpu

# --- model hyper-parameters (from the PyTorch module) ---
VOCAB_SIZE = 100          # len(vocab) -- synthetic choice
EMBED_LEN = 50
HIDDEN_DIM = 75
N_CLASSES = 3             # len(html_label)
N_LAYERS = 1

# --- padded sizes for TPU tiling ---
B_PAD = 8                               # sublane-friendly batch
H_PAD = 128                             # lane-padded hidden dim (one gate per 128 lanes)
G_PAD = 4 * H_PAD                       # fused gate width (i, f, g, o)
O_PAD = 128                             # lane-padded output (classes) dim
V_PAD = ((VOCAB_SIZE + 7) // 8) * 8     # sublane-padded vocab rows for the table


def _lstm_kernel(ids_ref, proj_ref, whh_ref, h0_ref, c0_ref,
                 wlin_ref, blin_ref, out_ref, xg_scr, *, T, B):
    """Gathered input projection + fused-gate LSTM recurrence + ReLU + classifier.

    ids_ref  : (B, T)             int32 SMEM (scalar prefetch) token ids
    proj_ref : (V_PAD, 4*H_PAD)   f32   token -> gate preactivations (incl. b_ih+b_hh)
    whh_ref  : (H_PAD, 4*H_PAD)   bf16  fused hidden->gates weights
    h0/c0    : (B_PAD, H_PAD)     f32   initial state
    wlin_ref : (H_PAD, O_PAD)     bf16  classifier weights (transposed)
    blin_ref : (1, O_PAD)         f32   classifier bias
    out_ref  : (B_PAD, O_PAD)     f32
    xg_scr   : (T*B_PAD, 4*H_PAD) f32   gathered input gate preactivations
    """
    # --- hoisted gather: one table row per real (t, b); padded batch rows = 0 ---
    xg_scr[...] = jnp.zeros_like(xg_scr)
    for t in range(T):                       # T, B are trace-time constants
        for b in range(B):
            tok = ids_ref[b, t]              # scalar read from SMEM
            xg_scr[pl.ds(t * B_PAD + b, 1), :] = proj_ref[pl.ds(tok, 1), :]

    h = h0_ref[...]                          # f32 value (1 vreg)
    c = c0_ref[...]                          # f32 value (1 vreg)

    # --- fully unrolled recurrence; h/c carried as values, not VMEM refs ---
    for t in range(T):
        gates = (xg_scr[pl.ds(t * B_PAD, B_PAD), :]
                 + jnp.dot(h.astype(jnp.bfloat16), whh_ref[...],
                           preferred_element_type=jnp.float32))
        # PyTorch gate order: i, f, g, o (static 128-lane slices)
        i_g = jax.nn.sigmoid(gates[:, 0 * H_PAD:1 * H_PAD])
        f_g = jax.nn.sigmoid(gates[:, 1 * H_PAD:2 * H_PAD])
        g_g = jnp.tanh(gates[:, 2 * H_PAD:3 * H_PAD])
        o_g = jax.nn.sigmoid(gates[:, 3 * H_PAD:4 * H_PAD])
        c = f_g * c + i_g * g_g
        h = o_g * jnp.tanh(c)

    # output = self.linear(self.relu(output)[:, -1])  <=>  relu(h_T) @ W^T + b
    h_last = jnp.maximum(h, 0.0).astype(jnp.bfloat16)
    out_ref[...] = (jnp.dot(h_last, wlin_ref[...],
                            preferred_element_type=jnp.float32)
                    + blin_ref[...])


def _fuse_gate_weights(w, in_dim, in_pad):
    """(4*H, in_dim) PyTorch-layout gate weights -> (in_pad, 4*H_PAD) fused,
    pre-transposed, zero-padded (each gate occupies one 128-lane block)."""
    w4 = w.reshape(4, HIDDEN_DIM, in_dim)            # (4, H, in)
    w4 = jnp.transpose(w4, (2, 0, 1))                # (in, 4, H)
    w4 = jnp.pad(w4, ((0, in_pad - in_dim), (0, 0), (0, H_PAD - HIDDEN_DIM)))
    return w4.reshape(in_pad, G_PAD)


def prepare_params(params):
    """One-time weight prep outside the jitted forward."""
    emb_table, w_ih, w_hh, b_ih, b_hh, w_lin, b_lin = params

    # token -> fused gate-preactivation table: emb @ W_ih^T + (b_ih + b_hh),
    # f32, one 128-lane block per gate, computed once at highest precision.
    proj = jnp.einsum("ve,ghe->vgh", emb_table,
                      w_ih.reshape(4, HIDDEN_DIM, EMBED_LEN),
                      precision=jax.lax.Precision.HIGHEST)
    proj = proj + (b_ih + b_hh).reshape(1, 4, HIDDEN_DIM)
    proj = jnp.pad(proj, ((0, V_PAD - VOCAB_SIZE), (0, 0),
                          (0, H_PAD - HIDDEN_DIM)))
    proj_table = proj.reshape(V_PAD, G_PAD).astype(jnp.float32)

    whh_f = _fuse_gate_weights(w_hh, HIDDEN_DIM, H_PAD).astype(jnp.bfloat16)
    wlin_p = jnp.pad(jnp.transpose(w_lin),
                     ((0, H_PAD - HIDDEN_DIM), (0, O_PAD - N_CLASSES))
                     ).astype(jnp.bfloat16)
    blin_p = jnp.pad(b_lin.reshape(1, N_CLASSES),
                     ((0, 0), (0, O_PAD - N_CLASSES))).astype(jnp.float32)
    return (proj_table, whh_f, wlin_p, blin_p)


@jax.jit
def lstm_classifier_forward(X, prepped, h0, c0):
    """Forward pass matching LSTMClassifier.forward (h0/c0 passed in explicitly,
    standing in for the torch.randn initial state)."""
    proj_table, whh_f, wlin_p, blin_p = prepped
    B, T = X.shape

    h0_p = jnp.pad(h0.astype(jnp.float32),
                   ((0, B_PAD - B), (0, H_PAD - HIDDEN_DIM)))
    c0_p = jnp.pad(c0.astype(jnp.float32),
                   ((0, B_PAD - B), (0, H_PAD - HIDDEN_DIM)))

    vmem = pl.BlockSpec(memory_space=pltpu.MemorySpace.VMEM)
    out = pl.pallas_call(
        functools.partial(_lstm_kernel, T=T, B=B),
        out_shape=jax.ShapeDtypeStruct((B_PAD, O_PAD), jnp.float32),
        grid_spec=pltpu.PrefetchScalarGridSpec(
            num_scalar_prefetch=1,                 # token ids -> SMEM
            grid=(1,),
            in_specs=[vmem] * 6,
            out_specs=vmem,
            scratch_shapes=[pltpu.VMEM((T * B_PAD, G_PAD), jnp.float32)],
        ),
    )(X.astype(jnp.int32), proj_table, whh_f, h0_p, c0_p, wlin_p, blin_p)

    return out[:B, :N_CLASSES]


def _ref_forward(X, params, h0, c0):
    """Pure-JAX f32 reference matching the PyTorch semantics."""
    emb_table, w_ih, w_hh, b_ih, b_hh, w_lin, b_lin = params
    emb = emb_table[X]                                   # (B, T, E)
    hp = jax.lax.Precision.HIGHEST

    def step(carry, x_t):
        h, c = carry
        z = (jnp.dot(x_t, w_ih.T, precision=hp) + b_ih
             + jnp.dot(h, w_hh.T, precision=hp) + b_hh)  # (B, 4H)
        i, f, g, o = jnp.split(z, 4, axis=-1)
        i = jax.nn.sigmoid(i); f = jax.nn.sigmoid(f)
        g = jnp.tanh(g);       o = jax.nn.sigmoid(o)
        c = f * c + i * g
        h = o * jnp.tanh(c)
        return (h, c), h

    (h_T, _), _ = lax.scan(step, (h0, c0), jnp.transpose(emb, (1, 0, 2)))
    return jnp.dot(jnp.maximum(h_T, 0.0), w_lin.T, precision=hp) + b_lin


def _init_params(key):
    ks = jax.random.split(key, 7)
    s = 1.0 / jnp.sqrt(HIDDEN_DIM)
    emb_table = jax.random.normal(ks[0], (VOCAB_SIZE, EMBED_LEN), jnp.float32)
    w_ih = jax.random.uniform(ks[1], (4 * HIDDEN_DIM, EMBED_LEN), jnp.float32, -s, s)
    w_hh = jax.random.uniform(ks[2], (4 * HIDDEN_DIM, HIDDEN_DIM), jnp.float32, -s, s)
    b_ih = jax.random.uniform(ks[3], (4 * HIDDEN_DIM,), jnp.float32, -s, s)
    b_hh = jax.random.uniform(ks[4], (4 * HIDDEN_DIM,), jnp.float32, -s, s)
    w_lin = jax.random.uniform(ks[5], (N_CLASSES, HIDDEN_DIM), jnp.float32, -s, s)
    b_lin = jax.random.uniform(ks[6], (N_CLASSES,), jnp.float32, -s, s)
    return (emb_table, w_ih, w_hh, b_ih, b_hh, w_lin, b_lin)


if __name__ == "__main__":
    B, T = 2, 8
    key = jax.random.PRNGKey(0)
    k_par, k_tok, k_h, k_c = jax.random.split(key, 4)

    params = _init_params(k_par)
    prepped = prepare_params(params)          # one-time weight / table prep
    X = jax.random.randint(k_tok, (B, T), 0, VOCAB_SIZE, jnp.int32)
    # stand-in for torch.randn initial hidden/carry (deterministic here)
    h0 = jax.random.normal(k_h, (B, HIDDEN_DIM), jnp.float32)
    c0 = jax.random.normal(k_c, (B, HIDDEN_DIM), jnp.float32)

    out = lstm_classifier_forward(X, prepped, h0, c0)
    out = jax.block_until_ready(out)

    ref = _ref_forward(X, params, h0, c0)
    assert out.shape == (B, N_CLASSES)
    # f32 token->gate table removes the old W_ih bf16 error; remaining error is
    # only the bf16 h@W_hh recurrence and the bf16 classifier matmul.
    assert jnp.allclose(out, ref, atol=2e-2, rtol=2e-2), (out, ref)
    print("KERNEL_OK")
</pallas_src>

<mosaic_0001>
module attributes {stable_mosaic.version = 11 : i64} {
  func.func @_lstm_kernel(%arg0: i32, %arg1: memref<2x8xi32, #tpu.memory_space<smem>>, %arg2: memref<104x512xf32, #tpu.memory_space<vmem>>, %arg3: memref<128x512xbf16, #tpu.memory_space<vmem>>, %arg4: memref<8x128xf32, #tpu.memory_space<vmem>>, %arg5: memref<8x128xf32, #tpu.memory_space<vmem>>, %arg6: memref<128x128xbf16, #tpu.memory_space<vmem>>, %arg7: memref<1x128xf32, #tpu.memory_space<vmem>>, %arg8: memref<8x128xf32, #tpu.memory_space<vmem>>, %arg9: memref<64x512xf32, #tpu.memory_space<vmem>>) attributes {dimension_semantics = [#tpu.dimension_semantics<arbitrary>], iteration_bounds = array<i64: 1>, scalar_prefetch = 1 : i64, scratch_operands = 1 : i64, tpu.core_type = #tpu.core_type<tc>, window_params = [{pipeline_mode = #tpu.pipeline_mode<synchronous>, transform_indices = @transform_0, window_bounds = array<i64: 104, 512>}, {pipeline_mode = #tpu.pipeline_mode<synchronous>, transform_indices = @transform_1, window_bounds = array<i64: 128, 512>}, {pipeline_mode = #tpu.pipeline_mode<synchronous>, transform_indices = @transform_2, window_bounds = array<i64: 8, 128>}, {pipeline_mode = #tpu.pipeline_mode<synchronous>, transform_indices = @transform_3, window_bounds = array<i64: 8, 128>}, {pipeline_mode = #tpu.pipeline_mode<synchronous>, transform_indices = @transform_4, window_bounds = array<i64: 128, 128>}, {pipeline_mode = #tpu.pipeline_mode<synchronous>, transform_indices = @transform_5, window_bounds = array<i64: 1, 128>}, {pipeline_mode = #tpu.pipeline_mode<synchronous>, transform_indices = @transform_6, window_bounds = array<i64: 8, 128>}]} {
    %cst = arith.constant 0.000000e+00 : f32
    %0 = vector.broadcast %cst : f32 to vector<64x512xf32>
    %c0 = arith.constant 0 : index
    %c0_0 = arith.constant 0 : index
    %1 = vector.load %arg9[%c0, %c0_0] : memref<64x512xf32, #tpu.memory_space<vmem>>, vector<64x512xf32>
    tpu.vector_store %arg9[%c0, %c0_0], %0 {strides = array<i32>} : memref<64x512xf32, #tpu.memory_space<vmem>>, vector<64x512xf32>,
    %c0_1 = arith.constant 0 : index
    %c0_2 = arith.constant 0 : index
    %2 = memref.load %arg1[%c0_1, %c0_2] : memref<2x8xi32, #tpu.memory_space<smem>>
    %3 = arith.index_cast %2 : i32 to index
    %c0_3 = arith.constant 0 : index
    %4 = vector.load %arg2[%3, %c0_3] : memref<104x512xf32, #tpu.memory_space<vmem>>, vector<1x512xf32>
    %c0_4 = arith.constant 0 : index
    %c0_5 = arith.constant 0 : index
    %5 = vector.load %arg9[%c0_4, %c0_5] : memref<64x512xf32, #tpu.memory_space<vmem>>, vector<1x512xf32>
    tpu.vector_store %arg9[%c0_4, %c0_5], %4 {strides = array<i32>} : memref<64x512xf32, #tpu.memory_space<vmem>>, vector<1x512xf32>,
    %c1 = arith.constant 1 : index
    %c0_6 = arith.constant 0 : index
    %6 = memref.load %arg1[%c1, %c0_6] : memref<2x8xi32, #tpu.memory_space<smem>>
    %7 = arith.index_cast %6 : i32 to index
    %c0_7 = arith.constant 0 : index
    %8 = vector.load %arg2[%7, %c0_7] : memref<104x512xf32, #tpu.memory_space<vmem>>, vector<1x512xf32>
    %c1_8 = arith.constant 1 : index
    %c0_9 = arith.constant 0 : index
    %9 = vector.load %arg9[%c1_8, %c0_9] : memref<64x512xf32, #tpu.memory_space<vmem>>, vector<1x512xf32>
    tpu.vector_store %arg9[%c1_8, %c0_9], %8 {strides = array<i32>} : memref<64x512xf32, #tpu.memory_space<vmem>>, vector<1x512xf32>,
    %c0_10 = arith.constant 0 : index
    %c1_11 = arith.constant 1 : index
    %10 = memref.load %arg1[%c0_10, %c1_11] : memref<2x8xi32, #tpu.memory_space<smem>>
    %11 = arith.index_cast %10 : i32 to index
    %c0_12 = arith.constant 0 : index
    %12 = vector.load %arg2[%11, %c0_12] : memref<104x512xf32, #tpu.memory_space<vmem>>, vector<1x512xf32>
    %c8 = arith.constant 8 : index
    %c0_13 = arith.constant 0 : index
    %13 = vector.load %arg9[%c8, %c0_13] : memref<64x512xf32, #tpu.memory_space<vmem>>, vector<1x512xf32>
    tpu.vector_store %arg9[%c8, %c0_13], %12 {strides = array<i32>} : memref<64x512xf32, #tpu.memory_space<vmem>>, vector<1x512xf32>,
    %c1_14 = arith.constant 1 : index
    %c1_15 = arith.constant 1 : index
    %14 = memref.load %arg1[%c1_14, %c1_15] : memref<2x8xi32, #tpu.memory_space<smem>>
    %15 = arith.index_cast %14 : i32 to index
    %c0_16 = arith.constant 0 : index
    %16 = vector.load %arg2[%15, %c0_16] : memref<104x512xf32, #tpu.memory_space<vmem>>, vector<1x512xf32>
    %c9 = arith.constant 9 : index
    %c0_17 = arith.constant 0 : index
    %17 = vector.load %arg9[%c9, %c0_17] : memref<64x512xf32, #tpu.memory_space<vmem>>, vector<1x512xf32>
    tpu.vector_store %arg9[%c9, %c0_17], %16 {strides = array<i32>} : memref<64x512xf32, #tpu.memory_space<vmem>>, vector<1x512xf32>,
    %c0_18 = arith.constant 0 : index
    %c2 = arith.constant 2 : index
    %18 = memref.load %arg1[%c0_18, %c2] : memref<2x8xi32, #tpu.memory_space<smem>>
    %19 = arith.index_cast %18 : i32 to index
    %c0_19 = arith.constant 0 : index
    %20 = vector.load %arg2[%19, %c0_19] : memref<104x512xf32, #tpu.memory_space<vmem>>, vector<1x512xf32>
    %c16 = arith.constant 16 : index
    %c0_20 = arith.constant 0 : index
    %21 = vector.load %arg9[%c16, %c0_20] : memref<64x512xf32, #tpu.memory_space<vmem>>, vector<1x512xf32>
    tpu.vector_store %arg9[%c16, %c0_20], %20 {strides = array<i32>} : memref<64x512xf32, #tpu.memory_space<vmem>>, vector<1x512xf32>,
    %c1_21 = arith.constant 1 : index
    %c2_22 = arith.constant 2 : index
    %22 = memref.load %arg1[%c1_21, %c2_22] : memref<2x8xi32, #tpu.memory_space<smem>>
    %23 = arith.index_cast %22 : i32 to index
    %c0_23 = arith.constant 0 : index
    %24 = vector.load %arg2[%23, %c0_23] : memref<104x512xf32, #tpu.memory_space<vmem>>, vector<1x512xf32>
    %c17 = arith.constant 17 : index
    %c0_24 = arith.constant 0 : index
    %25 = vector.load %arg9[%c17, %c0_24] : memref<64x512xf32, #tpu.memory_space<vmem>>, vector<1x512xf32>
    tpu.vector_store %arg9[%c17, %c0_24], %24 {strides = array<i32>} : memref<64x512xf32, #tpu.memory_space<vmem>>, vector<1x512xf32>,
    %c0_25 = arith.constant 0 : index
    %c3 = arith.constant 3 : index
    %26 = memref.load %arg1[%c0_25, %c3] : memref<2x8xi32, #tpu.memory_space<smem>>
    %27 = arith.index_cast %26 : i32 to index
    %c0_26 = arith.constant 0 : index
    %28 = vector.load %arg2[%27, %c0_26] : memref<104x512xf32, #tpu.memory_space<vmem>>, vector<1x512xf32>
    %c24 = arith.constant 24 : index
    %c0_27 = arith.constant 0 : index
    %29 = vector.load %arg9[%c24, %c0_27] : memref<64x512xf32, #tpu.memory_space<vmem>>, vector<1x512xf32>
    tpu.vector_store %arg9[%c24, %c0_27], %28 {strides = array<i32>} : memref<64x512xf32, #tpu.memory_space<vmem>>, vector<1x512xf32>,
    %c1_28 = arith.constant 1 : index
    %c3_29 = arith.constant 3 : index
    %30 = memref.load %arg1[%c1_28, %c3_29] : memref<2x8xi32, #tpu.memory_space<smem>>
    %31 = arith.index_cast %30 : i32 to index
    %c0_30 = arith.constant 0 : index
    %32 = vector.load %arg2[%31, %c0_30] : memref<104x512xf32, #tpu.memory_space<vmem>>, vector<1x512xf32>
    %c25 = arith.constant 25 : index
    %c0_31 = arith.constant 0 : index
    %33 = vector.load %arg9[%c25, %c0_31] : memref<64x512xf32, #tpu.memory_space<vmem>>, vector<1x512xf32>
    tpu.vector_store %arg9[%c25, %c0_31], %32 {strides = array<i32>} : memref<64x512xf32, #tpu.memory_space<vmem>>, vector<1x512xf32>,
    %c0_32 = arith.constant 0 : index
    %c4 = arith.constant 4 : index
    %34 = memref.load %arg1[%c0_32, %c4] : memref<2x8xi32, #tpu.memory_space<smem>>
    %35 = arith.index_cast %34 : i32 to index
    %c0_33 = arith.constant 0 : index
    %36 = vector.load %arg2[%35, %c0_33] : memref<104x512xf32, #tpu.memory_space<vmem>>, vector<1x512xf32>
    %c32 = arith.constant 32 : index
    %c0_34 = arith.constant 0 : index
    %37 = vector.load %arg9[%c32, %c0_34] : memref<64x512xf32, #tpu.memory_space<vmem>>, vector<1x512xf32>
    tpu.vector_store %arg9[%c32, %c0_34], %36 {strides = array<i32>} : memref<64x512xf32, #tpu.memory_space<vmem>>, vector<1x512xf32>,
    %c1_35 = arith.constant 1 : index
    %c4_36 = arith.constant 4 : index
    %38 = memref.load %arg1[%c1_35, %c4_36] : memref<2x8xi32, #tpu.memory_space<smem>>
    %39 = arith.index_cast %38 : i32 to index
    %c0_37 = arith.constant 0 : index
    %40 = vector.load %arg2[%39, %c0_37] : memref<104x512xf32, #tpu.memory_space<vmem>>, vector<1x512xf32>
    %c33 = arith.constant 33 : index
    %c0_38 = arith.constant 0 : index
    %41 = vector.load %arg9[%c33, %c0_38] : memref<64x512xf32, #tpu.memory_space<vmem>>, vector<1x512xf32>
    tpu.vector_store %arg9[%c33, %c0_38], %40 {strides = array<i32>} : memref<64x512xf32, #tpu.memory_space<vmem>>, vector<1x512xf32>,
    %c0_39 = arith.constant 0 : index
    %c5 = arith.constant 5 : index
    %42 = memref.load %arg1[%c0_39, %c5] : memref<2x8xi32, #tpu.memory_space<smem>>
    %43 = arith.index_cast %42 : i32 to index
    %c0_40 = arith.constant 0 : index
    %44 = vector.load %arg2[%43, %c0_40] : memref<104x512xf32, #tpu.memory_space<vmem>>, vector<1x512xf32>
    %c40 = arith.constant 40 : index
    %c0_41 = arith.constant 0 : index
    %45 = vector.load %arg9[%c40, %c0_41] : memref<64x512xf32, #tpu.memory_space<vmem>>, vector<1x512xf32>
    tpu.vector_store %arg9[%c40, %c0_41], %44 {strides = array<i32>} : memref<64x512xf32, #tpu.memory_space<vmem>>, vector<1x512xf32>,
    %c1_42 = arith.constant 1 : index
    %c5_43 = arith.constant 5 : index
    %46 = memref.load %arg1[%c1_42, %c5_43] : memref<2x8xi32, #tpu.memory_space<smem>>
    %47 = arith.index_cast %46 : i32 to index
    %c0_44 = arith.constant 0 : index
    %48 = vector.load %arg2[%47, %c0_44] : memref<104x512xf32, #tpu.memory_space<vmem>>, vector<1x512xf32>
    %c41 = arith.constant 41 : index
    %c0_45 = arith.constant 0 : index
    %49 = vector.load %arg9[%c41, %c0_45] : memref<64x512xf32, #tpu.memory_space<vmem>>, vector<1x512xf32>
    tpu.vector_store %arg9[%c41, %c0_45], %48 {strides = array<i32>} : memref<64x512xf32, #tpu.memory_space<vmem>>, vector<1x512xf32>,
    %c0_46 = arith.constant 0 : index
    %c6 = arith.constant 6 : index
    %50 = memref.load %arg1[%c0_46, %c6] : memref<2x8xi32, #tpu.memory_space<smem>>
    %51 = arith.index_cast %50 : i32 to index
    %c0_47 = arith.constant 0 : index
    %52 = vector.load %arg2[%51, %c0_47] : memref<104x512xf32, #tpu.memory_space<vmem>>, vector<1x512xf32>
    %c48 = arith.constant 48 : index
    %c0_48 = arith.constant 0 : index
    %53 = vector.load %arg9[%c48, %c0_48] : memref<64x512xf32, #tpu.memory_space<vmem>>, vector<1x512xf32>
    tpu.vector_store %arg9[%c48, %c0_48], %52 {strides = array<i32>} : memref<64x512xf32, #tpu.memory_space<vmem>>, vector<1x512xf32>,
    %c1_49 = arith.constant 1 : index
    %c6_50 = arith.constant 6 : index
    %54 = memref.load %arg1[%c1_49, %c6_50] : memref<2x8xi32, #tpu.memory_space<smem>>
    %55 = arith.index_cast %54 : i32 to index
    %c0_51 = arith.constant 0 : index
    %56 = vector.load %arg2[%55, %c0_51] : memref<104x512xf32, #tpu.memory_space<vmem>>, vector<1x512xf32>
    %c49 = arith.constant 49 : index
    %c0_52 = arith.constant 0 : index
    %57 = vector.load %arg9[%c49, %c0_52] : memref<64x512xf32, #tpu.memory_space<vmem>>, vector<1x512xf32>
    tpu.vector_store %arg9[%c49, %c0_52], %56 {strides = array<i32>} : memref<64x512xf32, #tpu.memory_space<vmem>>, vector<1x512xf32>,
    %c0_53 = arith.constant 0 : index
    %c7 = arith.constant 7 : index
    %58 = memref.load %arg1[%c0_53, %c7] : memref<2x8xi32, #tpu.memory_space<smem>>
    %59 = arith.index_cast %58 : i32 to index
    %c0_54 = arith.constant 0 : index
    %60 = vector.load %arg2[%59, %c0_54] : memref<104x512xf32, #tpu.memory_space<vmem>>, vector<1x512xf32>
    %c56 = arith.constant 56 : index
    %c0_55 = arith.constant 0 : index
    %61 = vector.load %arg9[%c56, %c0_55] : memref<64x512xf32, #tpu.memory_space<vmem>>, vector<1x512xf32>
    tpu.vector_store %arg9[%c56, %c0_55], %60 {strides = array<i32>} : memref<64x512xf32, #tpu.memory_space<vmem>>, vector<1x512xf32>,
    %c1_56 = arith.constant 1 : index
    %c7_57 = arith.constant 7 : index
    %62 = memref.load %arg1[%c1_56, %c7_57] : memref<2x8xi32, #tpu.memory_space<smem>>
    %63 = arith.index_cast %62 : i32 to index
    %c0_58 = arith.constant 0 : index
    %64 = vector.load %arg2[%63, %c0_58] : memref<104x512xf32, #tpu.memory_space<vmem>>, vector<1x512xf32>
    %c57 = arith.constant 57 : index
    %c0_59 = arith.constant 0 : index
    %65 = vector.load %arg9[%c57, %c0_59] : memref<64x512xf32, #tpu.memory_space<vmem>>, vector<1x512xf32>
    tpu.vector_store %arg9[%c57, %c0_59], %64 {strides = array<i32>} : memref<64x512xf32, #tpu.memory_space<vmem>>, vector<1x512xf32>,
    %c0_60 = arith.constant 0 : index
    %c0_61 = arith.constant 0 : index
    %66 = vector.load %arg4[%c0_60, %c0_61] : memref<8x128xf32, #tpu.memory_space<vmem>>, vector<8x128xf32>
    %c0_62 = arith.constant 0 : index
    %c0_63 = arith.constant 0 : index
    %67 = vector.load %arg5[%c0_62, %c0_63] : memref<8x128xf32, #tpu.memory_space<vmem>>, vector<8x128xf32>
    %c0_64 = arith.constant 0 : index
    %c0_65 = arith.constant 0 : index
    %68 = vector.load %arg9[%c0_64, %c0_65] : memref<64x512xf32, #tpu.memory_space<vmem>>, vector<8x512xf32>
    %69 = arith.truncf %66 : vector<8x128xf32> to vector<8x128xbf16>
    %c0_66 = arith.constant 0 : index
    %c0_67 = arith.constant 0 : index
    %70 = vector.load %arg3[%c0_66, %c0_67] : memref<128x512xbf16, #tpu.memory_space<vmem>>, vector<128x512xbf16>
    %cst_68 = arith.constant dense<0.000000e+00> : vector<8x512xf32>
    %71 = tpu.matmul %69, %70, %cst_68 {dimension_numbers = #tpu.dot_dimension_numbers<[1], [0], [0], [1], [0, 0, 1, 1], [], []>} : vector<8x128xbf16>, vector<128x512xbf16>, vector<8x512xf32> -> vector<8x512xf32>
    %72 = arith.addf %68, %71 : vector<8x512xf32>
    %73 = vector.extract_strided_slice %72 {offsets = [0, 0], sizes = [8, 128], strides = [1, 1]} : vector<8x512xf32> to vector<8x128xf32>
    %74 = arith.negf %73 : vector<8x128xf32>
    %75 = math.exp %74 : vector<8x128xf32>
    %cst_69 = arith.constant 1.000000e+00 : f32
    %76 = vector.broadcast %cst_69 : f32 to vector<8x128xf32>
    %77 = arith.addf %76, %75 : vector<8x128xf32>
    %78 = arith.divf %76, %77 : vector<8x128xf32>
    %79 = vector.extract_strided_slice %72 {offsets = [0, 128], sizes = [8, 128], strides = [1, 1]} : vector<8x512xf32> to vector<8x128xf32>
    %80 = arith.negf %79 : vector<8x128xf32>
    %81 = math.exp %80 : vector<8x128xf32>
    %cst_70 = arith.constant 1.000000e+00 : f32
    %82 = vector.broadcast %cst_70 : f32 to vector<8x128xf32>
    %83 = arith.addf %82, %81 : vector<8x128xf32>
    %84 = arith.divf %82, %83 : vector<8x128xf32>
    %85 = vector.extract_strided_slice %72 {offsets = [0, 256], sizes = [8, 128], strides = [1, 1]} : vector<8x512xf32> to vector<8x128xf32>
    %86 = math.tanh %85 : vector<8x128xf32>
    %87 = vector.extract_strided_slice %72 {offsets = [0, 384], sizes = [8, 128], strides = [1, 1]} : vector<8x512xf32> to vector<8x128xf32>
    %88 = arith.negf %87 : vector<8x128xf32>
    %89 = math.exp %88 : vector<8x128xf32>
    %cst_71 = arith.constant 1.000000e+00 : f32
    %90 = vector.broadcast %cst_71 : f32 to vector<8x128xf32>
    %91 = arith.addf %90, %89 : vector<8x128xf32>
    %92 = arith.divf %90, %91 : vector<8x128xf32>
    %93 = arith.mulf %84, %67 : vector<8x128xf32>
    %94 = arith.mulf %78, %86 : vector<8x128xf32>
    %95 = arith.addf %93, %94 : vector<8x128xf32>
    %96 = math.tanh %95 : vector<8x128xf32>
    %97 = arith.mulf %92, %96 : vector<8x128xf32>
    %c8_72 = arith.constant 8 : index
    %c0_73 = arith.constant 0 : index
    %98 = vector.load %arg9[%c8_72, %c0_73] : memref<64x512xf32, #tpu.memory_space<vmem>>, vector<8x512xf32>
    %99 = arith.truncf %97 : vector<8x128xf32> to vector<8x128xbf16>
    %c0_74 = arith.constant 0 : index
    %c0_75 = arith.constant 0 : index
    %100 = vector.load %arg3[%c0_74, %c0_75] : memref<128x512xbf16, #tpu.memory_space<vmem>>, vector<128x512xbf16>
    %cst_76 = arith.constant dense<0.000000e+00> : vector<8x512xf32>
    %101 = tpu.matmul %99, %100, %cst_76 {dimension_numbers = #tpu.dot_dimension_numbers<[1], [0], [0], [1], [0, 0, 1, 1], [], []>} : vector<8x128xbf16>, vector<128x512xbf16>, vector<8x512xf32> -> vector<8x512xf32>
    %102 = arith.addf %98, %101 : vector<8x512xf32>
    %103 = vector.extract_strided_slice %102 {offsets = [0, 0], sizes = [8, 128], strides = [1, 1]} : vector<8x512xf32> to vector<8x128xf32>
    %104 = arith.negf %103 : vector<8x128xf32>
    %105 = math.exp %104 : vector<8x128xf32>
    %cst_77 = arith.constant 1.000000e+00 : f32
    %106 = vector.broadcast %cst_77 : f32 to vector<8x128xf32>
    %107 = arith.addf %106, %105 : vector<8x128xf32>
    %108 = arith.divf %106, %107 : vector<8x128xf32>
    %109 = vector.extract_strided_slice %102 {offsets = [0, 128], sizes = [8, 128], strides = [1, 1]} : vector<8x512xf32> to vector<8x128xf32>
    %110 = arith.negf %109 : vector<8x128xf32>
    %111 = math.exp %110 : vector<8x128xf32>
    %cst_78 = arith.constant 1.000000e+00 : f32
    %112 = vector.broadcast %cst_78 : f32 to vector<8x128xf32>
    %113 = arith.addf %112, %111 : vector<8x128xf32>
    %114 = arith.divf %112, %113 : vector<8x128xf32>
    %115 = vector.extract_strided_slice %102 {offsets = [0, 256], sizes = [8, 128], strides = [1, 1]} : vector<8x512xf32> to vector<8x128xf32>
    %116 = math.tanh %115 : vector<8x128xf32>
    %117 = vector.extract_strided_slice %102 {offsets = [0, 384], sizes = [8, 128], strides = [1, 1]} : vector<8x512xf32> to vector<8x128xf32>
    %118 = arith.negf %117 : vector<8x128xf32>
    %119 = math.exp %118 : vector<8x128xf32>
    %cst_79 = arith.constant 1.000000e+00 : f32
    %120 = vector.broadcast %cst_79 : f32 to vector<8x128xf32>
    %121 = arith.addf %120, %119 : vector<8x128xf32>
    %122 = arith.divf %120, %121 : vector<8x128xf32>
    %123 = arith.mulf %114, %95 : vector<8x128xf32>
    %124 = arith.mulf %108, %116 : vector<8x128xf32>
    %125 = arith.addf %123, %124 : vector<8x128xf32>
    %126 = math.tanh %125 : vector<8x128xf32>
    %127 = arith.mulf %122, %126 : vector<8x128xf32>
    %c16_80 = arith.constant 16 : index
    %c0_81 = arith.constant 0 : index
    %128 = vector.load %arg9[%c16_80, %c0_81] : memref<64x512xf32, #tpu.memory_space<vmem>>, vector<8x512xf32>
    %129 = arith.truncf %127 : vector<8x128xf32> to vector<8x128xbf16>
    %c0_82 = arith.constant 0 : index
    %c0_83 = arith.constant 0 : index
    %130 = vector.load %arg3[%c0_82, %c0_83] : memref<128x512xbf16, #tpu.memory_space<vmem>>, vector<128x512xbf16>
    %cst_84 = arith.constant dense<0.000000e+00> : vector<8x512xf32>
    %131 = tpu.matmul %129, %130, %cst_84 {dimension_numbers = #tpu.dot_dimension_numbers<[1], [0], [0], [1], [0, 0, 1, 1], [], []>} : vector<8x128xbf16>, vector<128x512xbf16>, vector<8x512xf32> -> vector<8x512xf32>
    %132 = arith.addf %128, %131 : vector<8x512xf32>
    %133 = vector.extract_strided_slice %132 {offsets = [0, 0], sizes = [8, 128], strides = [1, 1]} : vector<8x512xf32> to vector<8x128xf32>
    %134 = arith.negf %133 : vector<8x128xf32>
    %135 = math.exp %134 : vector<8x128xf32>
    %cst_85 = arith.constant 1.000000e+00 : f32
    %136 = vector.broadcast %cst_85 : f32 to vector<8x128xf32>
    %137 = arith.addf %136, %135 : vector<8x128xf32>
    %138 = arith.divf %136, %137 : vector<8x128xf32>
    %139 = vector.extract_strided_slice %132 {offsets = [0, 128], sizes = [8, 128], strides = [1, 1]} : vector<8x512xf32> to vector<8x128xf32>
    %140 = arith.negf %139 : vector<8x128xf32>
    %141 = math.exp %140 : vector<8x128xf32>
    %cst_86 = arith.constant 1.000000e+00 : f32
    %142 = vector.broadcast %cst_86 : f32 to vector<8x128xf32>
    %143 = arith.addf %142, %141 : vector<8x128xf32>
    %144 = arith.divf %142, %143 : vector<8x128xf32>
    %145 = vector.extract_strided_slice %132 {offsets = [0, 256], sizes = [8, 128], strides = [1, 1]} : vector<8x512xf32> to vector<8x128xf32>
    %146 = math.tanh %145 : vector<8x128xf32>
    %147 = vector.extract_strided_slice %132 {offsets = [0, 384], sizes = [8, 128], strides = [1, 1]} : vector<8x512xf32> to vector<8x128xf32>
    %148 = arith.negf %147 : vector<8x128xf32>
    %149 = math.exp %148 : vector<8x128xf32>
    %cst_87 = arith.constant 1.000000e+00 : f32
    %150 = vector.broadcast %cst_87 : f32 to vector<8x128xf32>
    %151 = arith.addf %150, %149 : vector<8x128xf32>
    %152 = arith.divf %150, %151 : vector<8x128xf32>
    %153 = arith.mulf %144, %125 : vector<8x128xf32>
    %154 = arith.mulf %138, %146 : vector<8x128xf32>
    %155 = arith.addf %153, %154 : vector<8x128xf32>
    %156 = math.tanh %155 : vector<8x128xf32>
    %157 = arith.mulf %152, %156 : vector<8x128xf32>
    %c24_88 = arith.constant 24 : index
    %c0_89 = arith.constant 0 : index
    %158 = vector.load %arg9[%c24_88, %c0_89] : memref<64x512xf32, #tpu.memory_space<vmem>>, vector<8x512xf32>
    %159 = arith.truncf %157 : vector<8x128xf32> to vector<8x128xbf16>
    %c0_90 = arith.constant 0 : index
    %c0_91 = arith.constant 0 : index
    %160 = vector.load %arg3[%c0_90, %c0_91] : memref<128x512xbf16, #tpu.memory_space<vmem>>, vector<128x512xbf16>
    %cst_92 = arith.constant dense<0.000000e+00> : vector<8x512xf32>
    %161 = tpu.matmul %159, %160, %cst_92 {dimension_numbers = #tpu.dot_dimension_numbers<[1], [0], [0], [1], [0, 0, 1, 1], [], []>} : vector<8x128xbf16>, vector<128x512xbf16>, vector<8x512xf32> -> vector<8x512xf32>
    %162 = arith.addf %158, %161 : vector<8x512xf32>
    %163 = vector.extract_strided_slice %162 {offsets = [0, 0], sizes = [8, 128], strides = [1, 1]} : vector<8x512xf32> to vector<8x128xf32>
    %164 = arith.negf %163 : vector<8x128xf32>
    %165 = math.exp %164 : vector<8x128xf32>
    %cst_93 = arith.constant 1.000000e+00 : f32
    %166 = vector.broadcast %cst_93 : f32 to vector<8x128xf32>
    %167 = arith.addf %166, %165 : vector<8x128xf32>
    %168 = arith.divf %166, %167 : vector<8x128xf32>
    %169 = vector.extract_strided_slice %162 {offsets = [0, 128], sizes = [8, 128], strides = [1, 1]} : vector<8x512xf32> to vector<8x128xf32>
    %170 = arith.negf %169 : vector<8x128xf32>
    %171 = math.exp %170 : vector<8x128xf32>
    %cst_94 = arith.constant 1.000000e+00 : f32
    %172 = vector.broadcast %cst_94 : f32 to vector<8x128xf32>
    %173 = arith.addf %172, %171 : vector<8x128xf32>
    %174 = arith.divf %172, %173 : vector<8x128xf32>
    %175 = vector.extract_strided_slice %162 {offsets = [0, 256], sizes = [8, 128], strides = [1, 1]} : vector<8x512xf32> to vector<8x128xf32>
    %176 = math.tanh %175 : vector<8x128xf32>
    %177 = vector.extract_strided_slice %162 {offsets = [0, 384], sizes = [8, 128], strides = [1, 1]} : vector<8x512xf32> to vector<8x128xf32>
    %178 = arith.negf %177 : vector<8x128xf32>
    %179 = math.exp %178 : vector<8x128xf32>
    %cst_95 = arith.constant 1.000000e+00 : f32
    %180 = vector.broadcast %cst_95 : f32 to vector<8x128xf32>
    %181 = arith.addf %180, %179 : vector<8x128xf32>
    %182 = arith.divf %180, %181 : vector<8x128xf32>
    %183 = arith.mulf %174, %155 : vector<8x128xf32>
    %184 = arith.mulf %168, %176 : vector<8x128xf32>
    %185 = arith.addf %183, %184 : vector<8x128xf32>
    %186 = math.tanh %185 : vector<8x128xf32>
    %187 = arith.mulf %182, %186 : vector<8x128xf32>
    %c32_96 = arith.constant 32 : index
    %c0_97 = arith.constant 0 : index
    %188 = vector.load %arg9[%c32_96, %c0_97] : memref<64x512xf32, #tpu.memory_space<vmem>>, vector<8x512xf32>
    %189 = arith.truncf %187 : vector<8x128xf32> to vector<8x128xbf16>
    %c0_98 = arith.constant 0 : index
    %c0_99 = arith.constant 0 : index
    %190 = vector.load %arg3[%c0_98, %c0_99] : memref<128x512xbf16, #tpu.memory_space<vmem>>, vector<128x512xbf16>
    %cst_100 = arith.constant dense<0.000000e+00> : vector<8x512xf32>
    %191 = tpu.matmul %189, %190, %cst_100 {dimension_numbers = #tpu.dot_dimension_numbers<[1], [0], [0], [1], [0, 0, 1, 1], [], []>} : vector<8x128xbf16>, vector<128x512xbf16>, vector<8x512xf32> -> vector<8x512xf32>
    %192 = arith.addf %188, %191 : vector<8x512xf32>
    %193 = vector.extract_strided_slice %192 {offsets = [0, 0], sizes = [8, 128], strides = [1, 1]} : vector<8x512xf32> to vector<8x128xf32>
    %194 = arith.negf %193 : vector<8x128xf32>
    %195 = math.exp %194 : vector<8x128xf32>
    %cst_101 = arith.constant 1.000000e+00 : f32
    %196 = vector.broadcast %cst_101 : f32 to vector<8x128xf32>
    %197 = arith.addf %196, %195 : vector<8x128xf32>
    %198 = arith.divf %196, %197 : vector<8x128xf32>
    %199 = vector.extract_strided_slice %192 {offsets = [0, 128], sizes = [8, 128], strides = [1, 1]} : vector<8x512xf32> to vector<8x128xf32>
    %200 = arith.negf %199 : vector<8x128xf32>
    %201 = math.exp %200 : vector<8x128xf32>
    %cst_102 = arith.constant 1.000000e+00 : f32
    %202 = vector.broadcast %cst_102 : f32 to vector<8x128xf32>
    %203 = arith.addf %202, %201 : vector<8x128xf32>
    %204 = arith.divf %202, %203 : vector<8x128xf32>
    %205 = vector.extract_strided_slice %192 {offsets = [0, 256], sizes = [8, 128], strides = [1, 1]} : vector<8x512xf32> to vector<8x128xf32>
    %206 = math.tanh %205 : vector<8x128xf32>
    %207 = vector.extract_strided_slice %192 {offsets = [0, 384], sizes = [8, 128], strides = [1, 1]} : vector<8x512xf32> to vector<8x128xf32>
    %208 = arith.negf %207 : vector<8x128xf32>
    %209 = math.exp %208 : vector<8x128xf32>
    %cst_103 = arith.constant 1.000000e+00 : f32
    %210 = vector.broadcast %cst_103 : f32 to vector<8x128xf32>
    %211 = arith.addf %210, %209 : vector<8x128xf32>
    %212 = arith.divf %210, %211 : vector<8x128xf32>
    %213 = arith.mulf %204, %185 : vector<8x128xf32>
    %214 = arith.mulf %198, %206 : vector<8x128xf32>
    %215 = arith.addf %213, %214 : vector<8x128xf32>
    %216 = math.tanh %215 : vector<8x128xf32>
    %217 = arith.mulf %212, %216 : vector<8x128xf32>
    %c40_104 = arith.constant 40 : index
    %c0_105 = arith.constant 0 : index
    %218 = vector.load %arg9[%c40_104, %c0_105] : memref<64x512xf32, #tpu.memory_space<vmem>>, vector<8x512xf32>
    %219 = arith.truncf %217 : vector<8x128xf32> to vector<8x128xbf16>
    %c0_106 = arith.constant 0 : index
    %c0_107 = arith.constant 0 : index
    %220 = vector.load %arg3[%c0_106, %c0_107] : memref<128x512xbf16, #tpu.memory_space<vmem>>, vector<128x512xbf16>
    %cst_108 = arith.constant dense<0.000000e+00> : vector<8x512xf32>
    %221 = tpu.matmul %219, %220, %cst_108 {dimension_numbers = #tpu.dot_dimension_numbers<[1], [0], [0], [1], [0, 0, 1, 1], [], []>} : vector<8x128xbf16>, vector<128x512xbf16>, vector<8x512xf32> -> vector<8x512xf32>
    %222 = arith.addf %218, %221 : vector<8x512xf32>
    %223 = vector.extract_strided_slice %222 {offsets = [0, 0], sizes = [8, 128], strides = [1, 1]} : vector<8x512xf32> to vector<8x128xf32>
    %224 = arith.negf %223 : vector<8x128xf32>
    %225 = math.exp %224 : vector<8x128xf32>
    %cst_109 = arith.constant 1.000000e+00 : f32
    %226 = vector.broadcast %cst_109 : f32 to vector<8x128xf32>
    %227 = arith.addf %226, %225 : vector<8x128xf32>
    %228 = arith.divf %226, %227 : vector<8x128xf32>
    %229 = vector.extract_strided_slice %222 {offsets = [0, 128], sizes = [8, 128], strides = [1, 1]} : vector<8x512xf32> to vector<8x128xf32>
    %230 = arith.negf %229 : vector<8x128xf32>
    %231 = math.exp %230 : vector<8x128xf32>
    %cst_110 = arith.constant 1.000000e+00 : f32
    %232 = vector.broadcast %cst_110 : f32 to vector<8x128xf32>
    %233 = arith.addf %232, %231 : vector<8x128xf32>
    %234 = arith.divf %232, %233 : vector<8x128xf32>
    %235 = vector.extract_strided_slice %222 {offsets = [0, 256], sizes = [8, 128], strides = [1, 1]} : vector<8x512xf32> to vector<8x128xf32>
    %236 = math.tanh %235 : vector<8x128xf32>
    %237 = vector.extract_strided_slice %222 {offsets = [0, 384], sizes = [8, 128], strides = [1, 1]} : vector<8x512xf32> to vector<8x128xf32>
    %238 = arith.negf %237 : vector<8x128xf32>
    %239 = math.exp %238 : vector<8x128xf32>
    %cst_111 = arith.constant 1.000000e+00 : f32
    %240 = vector.broadcast %cst_111 : f32 to vector<8x128xf32>
    %241 = arith.addf %240, %239 : vector<8x128xf32>
    %242 = arith.divf %240, %241 : vector<8x128xf32>
    %243 = arith.mulf %234, %215 : vector<8x128xf32>
    %244 = arith.mulf %228, %236 : vector<8x128xf32>
    %245 = arith.addf %243, %244 : vector<8x128xf32>
    %246 = math.tanh %245 : vector<8x128xf32>
    %247 = arith.mulf %242, %246 : vector<8x128xf32>
    %c48_112 = arith.constant 48 : index
    %c0_113 = arith.constant 0 : index
    %248 = vector.load %arg9[%c48_112, %c0_113] : memref<64x512xf32, #tpu.memory_space<vmem>>, vector<8x512xf32>
    %249 = arith.truncf %247 : vector<8x128xf32> to vector<8x128xbf16>
    %c0_114 = arith.constant 0 : index
    %c0_115 = arith.constant 0 : index
    %250 = vector.load %arg3[%c0_114, %c0_115] : memref<128x512xbf16, #tpu.memory_space<vmem>>, vector<128x512xbf16>
    %cst_116 = arith.constant dense<0.000000e+00> : vector<8x512xf32>
    %251 = tpu.matmul %249, %250, %cst_116 {dimension_numbers = #tpu.dot_dimension_numbers<[1], [0], [0], [1], [0, 0, 1, 1], [], []>} : vector<8x128xbf16>, vector<128x512xbf16>, vector<8x512xf32> -> vector<8x512xf32>
    %252 = arith.addf %248, %251 : vector<8x512xf32>
    %253 = vector.extract_strided_slice %252 {offsets = [0, 0], sizes = [8, 128], strides = [1, 1]} : vector<8x512xf32> to vector<8x128xf32>
    %254 = arith.negf %253 : vector<8x128xf32>
    %255 = math.exp %254 : vector<8x128xf32>
    %cst_117 = arith.constant 1.000000e+00 : f32
    %256 = vector.broadcast %cst_117 : f32 to vector<8x128xf32>
    %257 = arith.addf %256, %255 : vector<8x128xf32>
    %258 = arith.divf %256, %257 : vector<8x128xf32>
    %259 = vector.extract_strided_slice %252 {offsets = [0, 128], sizes = [8, 128], strides = [1, 1]} : vector<8x512xf32> to vector<8x128xf32>
    %260 = arith.negf %259 : vector<8x128xf32>
    %261 = math.exp %260 : vector<8x128xf32>
    %cst_118 = arith.constant 1.000000e+00 : f32
    %262 = vector.broadcast %cst_118 : f32 to vector<8x128xf32>
    %263 = arith.addf %262, %261 : vector<8x128xf32>
    %264 = arith.divf %262, %263 : vector<8x128xf32>
    %265 = vector.extract_strided_slice %252 {offsets = [0, 256], sizes = [8, 128], strides = [1, 1]} : vector<8x512xf32> to vector<8x128xf32>
    %266 = math.tanh %265 : vector<8x128xf32>
    %267 = vector.extract_strided_slice %252 {offsets = [0, 384], sizes = [8, 128], strides = [1, 1]} : vector<8x512xf32> to vector<8x128xf32>
    %268 = arith.negf %267 : vector<8x128xf32>
    %269 = math.exp %268 : vector<8x128xf32>
    %cst_119 = arith.constant 1.000000e+00 : f32
    %270 = vector.broadcast %cst_119 : f32 to vector<8x128xf32>
    %271 = arith.addf %270, %269 : vector<8x128xf32>
    %272 = arith.divf %270, %271 : vector<8x128xf32>
    %273 = arith.mulf %264, %245 : vector<8x128xf32>
    %274 = arith.mulf %258, %266 : vector<8x128xf32>
    %275 = arith.addf %273, %274 : vector<8x128xf32>
    %276 = math.tanh %275 : vector<8x128xf32>
    %277 = arith.mulf %272, %276 : vector<8x128xf32>
    %c56_120 = arith.constant 56 : index
    %c0_121 = arith.constant 0 : index
    %278 = vector.load %arg9[%c56_120, %c0_121] : memref<64x512xf32, #tpu.memory_space<vmem>>, vector<8x512xf32>
    %279 = arith.truncf %277 : vector<8x128xf32> to vector<8x128xbf16>
    %c0_122 = arith.constant 0 : index
    %c0_123 = arith.constant 0 : index
    %280 = vector.load %arg3[%c0_122, %c0_123] : memref<128x512xbf16, #tpu.memory_space<vmem>>, vector<128x512xbf16>
    %cst_124 = arith.constant dense<0.000000e+00> : vector<8x512xf32>
    %281 = tpu.matmul %279, %280, %cst_124 {dimension_numbers = #tpu.dot_dimension_numbers<[1], [0], [0], [1], [0, 0, 1, 1], [], []>} : vector<8x128xbf16>, vector<128x512xbf16>, vector<8x512xf32> -> vector<8x512xf32>
    %282 = arith.addf %278, %281 : vector<8x512xf32>
    %283 = vector.extract_strided_slice %282 {offsets = [0, 0], sizes = [8, 128], strides = [1, 1]} : vector<8x512xf32> to vector<8x128xf32>
    %284 = arith.negf %283 : vector<8x128xf32>
    %285 = math.exp %284 : vector<8x128xf32>
    %cst_125 = arith.constant 1.000000e+00 : f32
    %286 = vector.broadcast %cst_125 : f32 to vector<8x128xf32>
    %287 = arith.addf %286, %285 : vector<8x128xf32>
    %288 = arith.divf %286, %287 : vector<8x128xf32>
    %289 = vector.extract_strided_slice %282 {offsets = [0, 128], sizes = [8, 128], strides = [1, 1]} : vector<8x512xf32> to vector<8x128xf32>
    %290 = arith.negf %289 : vector<8x128xf32>
    %291 = math.exp %290 : vector<8x128xf32>
    %cst_126 = arith.constant 1.000000e+00 : f32
    %292 = vector.broadcast %cst_126 : f32 to vector<8x128xf32>
    %293 = arith.addf %292, %291 : vector<8x128xf32>
    %294 = arith.divf %292, %293 : vector<8x128xf32>
    %295 = vector.extract_strided_slice %282 {offsets = [0, 256], sizes = [8, 128], strides = [1, 1]} : vector<8x512xf32> to vector<8x128xf32>
    %296 = math.tanh %295 : vector<8x128xf32>
    %297 = vector.extract_strided_slice %282 {offsets = [0, 384], sizes = [8, 128], strides = [1, 1]} : vector<8x512xf32> to vector<8x128xf32>
    %298 = arith.negf %297 : vector<8x128xf32>
    %299 = math.exp %298 : vector<8x128xf32>
    %cst_127 = arith.constant 1.000000e+00 : f32
    %300 = vector.broadcast %cst_127 : f32 to vector<8x128xf32>
    %301 = arith.addf %300, %299 : vector<8x128xf32>
    %302 = arith.divf %300, %301 : vector<8x128xf32>
    %303 = arith.mulf %294, %275 : vector<8x128xf32>
    %304 = arith.mulf %288, %296 : vector<8x128xf32>
    %305 = arith.addf %303, %304 : vector<8x128xf32>
    %306 = math.tanh %305 : vector<8x128xf32>
    %307 = arith.mulf %302, %306 : vector<8x128xf32>
    %cst_128 = arith.constant 0.000000e+00 : f32
    %308 = vector.broadcast %cst_128 : f32 to vector<8x128xf32>
    %309 = arith.maximumf %307, %308 : vector<8x128xf32>
    %310 = arith.truncf %309 : vector<8x128xf32> to vector<8x128xbf16>
    %c0_129 = arith.constant 0 : index
    %c0_130 = arith.constant 0 : index
    %311 = vector.load %arg6[%c0_129, %c0_130] : memref<128x128xbf16, #tpu.memory_space<vmem>>, vector<128x128xbf16>
    %cst_131 = arith.constant dense<0.000000e+00> : vector<8x128xf32>
    %312 = tpu.matmul %310, %311, %cst_131 {dimension_numbers = #tpu.dot_dimension_numbers<[1], [0], [0], [1], [0, 0, 1, 1], [], []>} : vector<8x128xbf16>, vector<128x128xbf16>, vector<8x128xf32> -> vector<8x128xf32>
    %c0_132 = arith.constant 0 : index
    %c0_133 = arith.constant 0 : index
    %313 = vector.load %arg7[%c0_132, %c0_133] : memref<1x128xf32, #tpu.memory_space<vmem>>, vector<1x128xf32>
    %314 = vector.broadcast %313 : vector<1x128xf32> to vector<8x128xf32>
    %315 = arith.addf %312, %314 : vector<8x128xf32>
    %c0_134 = arith.constant 0 : index
    %c0_135 = arith.constant 0 : index
    %316 = vector.load %arg8[%c0_134, %c0_135] : memref<8x128xf32, #tpu.memory_space<vmem>>, vector<8x128xf32>
    tpu.vector_store %arg8[%c0_134, %c0_135], %315 {strides = array<i32>} : memref<8x128xf32, #tpu.memory_space<vmem>>, vector<8x128xf32>,
    return
  }
  func.func @transform_0(%arg0: i32, %arg1: memref<2x8xi32, #tpu.memory_space<smem>>) -> (i32, i32) {
    %c0_i32 = arith.constant 0 : i32
    %c0_i32_0 = arith.constant 0 : i32
    %c0_i32_1 = arith.constant 0 : i32
    return %c0_i32, %c0_i32_0 : i32, i32
  }
  func.func @transform_1(%arg0: i32, %arg1: memref<2x8xi32, #tpu.memory_space<smem>>) -> (i32, i32) {
    %c0_i32 = arith.constant 0 : i32
    %c0_i32_0 = arith.constant 0 : i32
    %c0_i32_1 = arith.constant 0 : i32
    return %c0_i32, %c0_i32_0 : i32, i32
  }
  func.func @transform_2(%arg0: i32, %arg1: memref<2x8xi32, #tpu.memory_space<smem>>) -> (i32, i32) {
    %c0_i32 = arith.constant 0 : i32
    %c0_i32_0 = arith.constant 0 : i32
    %c0_i32_1 = arith.constant 0 : i32
    return %c0_i32, %c0_i32_0 : i32, i32
  }
  func.func @transform_3(%arg0: i32, %arg1: memref<2x8xi32, #tpu.memory_space<smem>>) -> (i32, i32) {
    %c0_i32 = arith.constant 0 : i32
    %c0_i32_0 = arith.constant 0 : i32
    %c0_i32_1 = arith.constant 0 : i32
    return %c0_i32, %c0_i32_0 : i32, i32
  }
  func.func @transform_4(%arg0: i32, %arg1: memref<2x8xi32, #tpu.memory_space<smem>>) -> (i32, i32) {
    %c0_i32 = arith.constant 0 : i32
    %c0_i32_0 = arith.constant 0 : i32
    %c0_i32_1 = arith.constant 0 : i32
    return %c0_i32, %c0_i32_0 : i32, i32
  }
  func.func @transform_5(%arg0: i32, %arg1: memref<2x8xi32, #tpu.memory_space<smem>>) -> (i32, i32) {
    %c0_i32 = arith.constant 0 : i32
    %c0_i32_0 = arith.constant 0 : i32
    %c0_i32_1 = arith.constant 0 : i32
    return %c0_i32, %c0_i32_0 : i32, i32
  }
  func.func @transform_6(%arg0: i32, %arg1: memref<2x8xi32, #tpu.memory_space<smem>>) -> (i32, i32) {
    %c0_i32 = arith.constant 0 : i32
    %c0_i32_0 = arith.constant 0 : i32
    %c0_i32_1 = arith.constant 0 : i32
    return %c0_i32, %c0_i32_0 : i32, i32
  }
}

</mosaic_0001>

<llo_original>
// kernel: lstm_classifier_forward.1
$region0: #{lstm_classifier_forward.1}
  #allocation0 [shape = 'u32[]', space=smem, size = 0x4, offset = 0x4, fixed_abs, tag = 'smem constant byte address 0x4 - core index']
  #allocation1 [shape = 'u32[72,128]{1,0:T(1,128)}', space=vmem, size = 0x9000, scoped, tag = 'internal scratch']
  #allocation2 [shape = 'f32[64,512]{1,0:T(8,128)}', space=vmem, size = 0x20000, scoped, tag = 'scratch operand']
  #allocation3 [shape = 's32[1]{0}', space=sflag, size = 0x4, scoped, tag = 'scoped memory for lstm_classifier_forward.1']
  #allocation4 [shape = 'u8[1024]{0}', space=smem, size = 0x400, scoped, tag = 'prefetched SMEM operand 0']
  %s0 = inlined_call_operand.vmem [shape: s32[2,8], index: 0, kind: input, shape index: {}]
  %s1 = inlined_call_operand.hbm [shape: f32[104,512], index: 1, kind: input, shape index: {}]
  %s2 = inlined_call_operand.hbm [shape: bf16[128,512], index: 2, kind: input, shape index: {}]
  %s3 = inlined_call_operand.vmem [shape: f32[8,128], index: 3, kind: input, shape index: {}]
  %s4 = inlined_call_operand.vmem [shape: f32[8,128], index: 4, kind: input, shape index: {}]
  %s5 = inlined_call_operand.hbm [shape: bf16[128,128], index: 5, kind: input, shape index: {}]
  %s6 = inlined_call_operand.vmem [shape: f32[1,128], index: 6, kind: input, shape index: {}]
  %s7 = inlined_call_operand.vmem [shape: f32[8,128], index: 7, kind: output, shape index: {}]
  %s8 = sld [smem:[#allocation0]]
  $region46: #{lstm_classifier_forward.1} parent=0
    _
  %s10 = ssub.s32 1, %s8
  %s11 = scalar_select 0, %s10, %s8
  %s13 = sshll.u32 %s0, 4
  %s14 = int_to_ptr.vmem [resolvable:$true] %s13
  %16 = dma.vmem_to_smem %s14, 32, [#allocation4], [#allocation3]
  %18 = dma.done [#allocation3], 32
  %19 = sfence
  $region1: #{lstm_classifier_forward.1} parent=0
    #allocation5 [shape = 'u8[212992]{0}', space=vmem, size = 0x34000, scoped, tag = 'input window, operand 1, single buffered']
    #allocation6 [shape = 's32[1]{0}', space=sflag, size = 0x4, scoped, tag = 'scoped memory for lstm_classifier_forward.1']
    #allocation7 [shape = 'u8[131072]{0}', space=vmem, size = 0x20000, scoped, tag = 'input window, operand 2, single buffered']
    #allocation8 [shape = 's32[1]{0}', space=sflag, size = 0x4, scoped, tag = 'scoped memory for lstm_classifier_forward.1']
    #allocation9 [shape = 'u8[32768]{0}', space=vmem, size = 0x8000, scoped, tag = 'input window, operand 5, single buffered']
    %20 = vsyncpa [#allocation6], 0
    %21 = vsyncpa [#allocation8], 0
    // Predicated region
    $region2: #{lstm_classifier_forward.1} parent=1 // pred_check
      _
    $region3: #{lstm_classifier_forward.1} parent=1 // pred_check_branch
      %23 = sbr.rel (0) target = $region5
    $region4: #{lstm_classifier_forward.1} parent=1 // pred_region
      %25 = vsyncadd [#allocation6], 0
      %s26 = sshll.u32 %s1, 4
      %s27 = int_to_ptr.hbm [resolvable:$true] %s26
      %s28 = sshll.u32 [#allocation5], 4
      %s29 = int_to_ptr.vmem [resolvable:$true] %s28
      %34 = dma.hbm_to_vmem [thread:$0]  %s27, 6656, %s29, [#allocation6], 512, 512, 32
    $region5: #{lstm_classifier_forward.1} parent=1 // pred_fallthru
      _
    // Predicated region
    $region6: #{lstm_classifier_forward.1} parent=1 // pred_check
      _
    $region7: #{lstm_classifier_forward.1} parent=1 // pred_check_branch
      %36 = sbr.rel (0) target = $region9
    $region8: #{lstm_classifier_forward.1} parent=1 // pred_region
      %38 = vsyncadd [#allocation8], 0
      %s39 = sshll.u32 %s2, 4
      %s40 = int_to_ptr.hbm [resolvable:$true] %s39
      %s41 = sshll.u32 [#allocation7], 4
      %s42 = int_to_ptr.vmem [resolvable:$true] %s41
      %47 = dma.hbm_to_vmem [thread:$0]  %s40, 4096, %s42, [#allocation8], 256, 256, 16
    $region9: #{lstm_classifier_forward.1} parent=1 // pred_fallthru
      _
    // Predicated region
    $region10: #{lstm_classifier_forward.1} parent=1 // pred_check
      _
    $region11: #{lstm_classifier_forward.1} parent=1 // pred_check_branch
      %49 = sbr.rel (0) target = $region13
    $region12: #{lstm_classifier_forward.1} parent=1 // pred_region
      _
    $region13: #{lstm_classifier_forward.1} parent=1 // pred_fallthru
      _
    // Predicated region
    $region14: #{lstm_classifier_forward.1} parent=1 // pred_check
      _
    $region15: #{lstm_classifier_forward.1} parent=1 // pred_check_branch
      %51 = sbr.rel (0) target = $region17
    $region16: #{lstm_classifier_forward.1} parent=1 // pred_region
      _
    $region17: #{lstm_classifier_forward.1} parent=1 // pred_fallthru
      _
    // Predicated region
    $region18: #{lstm_classifier_forward.1} parent=1 // pred_check
      _
    $region19: #{lstm_classifier_forward.1} parent=1 // pred_check_branch
      %53 = sbr.rel (0) target = $region21
    $region20: #{lstm_classifier_forward.1} parent=1 // pred_region
      %55 = vsyncadd [#allocation8], 0
      %s56 = sshll.u32 %s5, 4
      %s57 = int_to_ptr.hbm [resolvable:$true] %s56
      %s58 = sshll.u32 [#allocation9], 4
      %s59 = int_to_ptr.vmem [resolvable:$true] %s58
      %64 = dma.hbm_to_vmem [thread:$0]  %s57, 1024, %s59, [#allocation8], 64, 64, 4
    $region21: #{lstm_classifier_forward.1} parent=1 // pred_fallthru
      _
    // Predicated region
    $region22: #{lstm_classifier_forward.1} parent=1 // pred_check
      _
    $region23: #{lstm_classifier_forward.1} parent=1 // pred_check_branch
      %66 = sbr.rel (0) target = $region25
    $region24: #{lstm_classifier_forward.1} parent=1 // pred_region
      _
    $region25: #{lstm_classifier_forward.1} parent=1 // pred_fallthru
      _
    // Predicated region
    $region26: #{lstm_classifier_forward.1} parent=1 // pred_check
      _
    $region27: #{lstm_classifier_forward.1} parent=1 // pred_check_branch
      %68 = sbr.rel (0) target = $region29
    $region28: #{lstm_classifier_forward.1} parent=1 // pred_region
      %70 = dma.done [#allocation6], 6656
    $region29: #{lstm_classifier_forward.1} parent=1 // pred_fallthru
      _
    // Predicated region
    $region30: #{lstm_classifier_forward.1} parent=1 // pred_check
      _
    $region31: #{lstm_classifier_forward.1} parent=1 // pred_check_branch
      %72 = sbr.rel (0) target = $region33
    $region32: #{lstm_classifier_forward.1} parent=1 // pred_region
      %74 = dma.done [#allocation8], 4096
    $region33: #{lstm_classifier_forward.1} parent=1 // pred_fallthru
      _
    // Predicated region
    $region34: #{lstm_classifier_forward.1} parent=1 // pred_check
      _
    $region35: #{lstm_classifier_forward.1} parent=1 // pred_check_branch
      %76 = sbr.rel (0) target = $region37
    $region36: #{lstm_classifier_forward.1} parent=1 // pred_region
      %78 = dma.done [#allocation8], 1024
    $region37: #{lstm_classifier_forward.1} parent=1 // pred_fallthru
      _
    %79 = vst [vmem:[#allocation2] sm:$0xff] 0.0
    %80 = vst [vmem:[#allocation2 + $0x8] sm:$0xff] 0.0
    %81 = vst [vmem:[#allocation2 + $0x10] sm:$0xff] 0.0
    %82 = vst [vmem:[#allocation2 + $0x18] sm:$0xff] 0.0
    %83 = vst [vmem:[#allocation2 + $0x20] sm:$0xff] 0.0
    %84 = vst [vmem:[#allocation2 + $0x28] sm:$0xff] 0.0
    %85 = vst [vmem:[#allocation2 + $0x30] sm:$0xff] 0.0
    %86 = vst [vmem:[#allocation2 + $0x38] sm:$0xff] 0.0
    %87 = vst [vmem:[#allocation2 + $0x40] sm:$0xff] 0.0
    %88 = vst [vmem:[#allocation2 + $0x48] sm:$0xff] 0.0
    %89 = vst [vmem:[#allocation2 + $0x50] sm:$0xff] 0.0
    %90 = vst [vmem:[#allocation2 + $0x58] sm:$0xff] 0.0
    %91 = vst [vmem:[#allocation2 + $0x60] sm:$0xff] 0.0
    %92 = vst [vmem:[#allocation2 + $0x68] sm:$0xff] 0.0
    %93 = vst [vmem:[#allocation2 + $0x70] sm:$0xff] 0.0
    %94 = vst [vmem:[#allocation2 + $0x78] sm:$0xff] 0.0
    %95 = vst [vmem:[#allocation2 + $0x80] sm:$0xff] 0.0
    %96 = vst [vmem:[#allocation2 + $0x88] sm:$0xff] 0.0
    %97 = vst [vmem:[#allocation2 + $0x90] sm:$0xff] 0.0
    %98 = vst [vmem:[#allocation2 + $0x98] sm:$0xff] 0.0
    %99 = vst [vmem:[#allocation2 + $0xa0] sm:$0xff] 0.0
    %100 = vst [vmem:[#allocation2 + $0xa8] sm:$0xff] 0.0
    %101 = vst [vmem:[#allocation2 + $0xb0] sm:$0xff] 0.0
    %102 = vst [vmem:[#allocation2 + $0xb8] sm:$0xff] 0.0
    %103 = vst [vmem:[#allocation2 + $0xc0] sm:$0xff] 0.0
    %104 = vst [vmem:[#allocation2 + $0xc8] sm:$0xff] 0.0
    %105 = vst [vmem:[#allocation2 + $0xd0] sm:$0xff] 0.0
    %106 = vst [vmem:[#allocation2 + $0xd8] sm:$0xff] 0.0
    %107 = vst [vmem:[#allocation2 + $0xe0] sm:$0xff] 0.0
    %108 = vst [vmem:[#allocation2 + $0xe8] sm:$0xff] 0.0
    %109 = vst [vmem:[#allocation2 + $0xf0] sm:$0xff] 0.0
    %110 = vst [vmem:[#allocation2 + $0xf8] sm:$0xff] 0.0
    %s111 = sld [smem:[#allocation4]]
    %s112 = sshra.s32 %s111, 3
    %s113 = sand.u32 %s111, 7
    %s114 = sshra.s32 %s111, 3
    %s115 = sand.u32 %s111, 7
    %s116 = smul.u32 %s112, 4
    %s117 = smul.u32 %s116, 8
    %s118 = sadd.s32 %s117, %s115
    %s119 = scalar_lea.vmem [#allocation5], %s118
    %v120 = vld [vmem:[%s119] ss:$8 sm:$0xf]
    %v121 = vlaneseq
    %vm122 = vcmp.ge.s32.totalorder %v121, 0
    %vm123 = vcmp.lt.s32.totalorder %v121, 512
    %vm124 = vmand %vm122, %vm123
    %125 = vst.msk [vmem:[#allocation2] ss:$8 sm:$0xf] %vm124, %v120
    %126 = vst.msk [vmem:[#allocation2] ss:$8 sm:$0x0] %vm124, %v120
    %s127 = sld [smem:[#allocation4 + $0x80]]
    %s128 = sshra.s32 %s127, 3
    %s129 = sand.u32 %s127, 7
    %s130 = sshra.s32 %s127, 3
    %s131 = sand.u32 %s127, 7
    %s132 = smul.u32 %s128, 4
    %s133 = smul.u32 %s132, 8
    %s134 = sadd.s32 %s133, %s131
    %s135 = scalar_lea.vmem [#allocation5], %s134
    %v136 = vld [vmem:[%s135] ss:$8 sm:$0xf]
    %s137 = scalar_lea.vmem [#allocation2], 1
    %138 = vst.msk [vmem:[%s137] ss:$8 sm:$0xf] %vm124, %v136
    %139 = vst.msk [vmem:[%s137] ss:$8 sm:$0x0] %vm124, %v136
    %s140 = sld [smem:[#allocation4 + $0x1]]
    %s141 = sshra.s32 %s140, 3
    %s142 = sand.u32 %s140, 7
    %s143 = sshra.s32 %s140, 3
    %s144 = sand.u32 %s140, 7
    %s145 = smul.u32 %s141, 4
    %s146 = smul.u32 %s145, 8
    %s147 = sadd.s32 %s146, %s144
    %s148 = scalar_lea.vmem [#allocation5], %s147
    %v149 = vld [vmem:[%s148] ss:$8 sm:$0xf]
    %s150 = scalar_lea.vmem [#allocation2], 32
    %151 = vst.msk [vmem:[%s150] ss:$8 sm:$0xf] %vm124, %v149
    %152 = vst.msk [vmem:[%s150] ss:$8 sm:$0x0] %vm124, %v149
    %s153 = sld [smem:[#allocation4 + $0x81]]
    %s154 = sshra.s32 %s153, 3
    %s155 = sand.u32 %s153, 7
    %s156 = sshra.s32 %s153, 3
    %s157 = sand.u32 %s153, 7
    %s158 = smul.u32 %s154, 4
    %s159 = smul.u32 %s158, 8
    %s160 = sadd.s32 %s159, %s157
    %s161 = scalar_lea.vmem [#allocation5], %s160
    %v162 = vld [vmem:[%s161] ss:$8 sm:$0xf]
    %s163 = scalar_lea.vmem [#allocation2], 33
    %164 = vst.msk [vmem:[%s163] ss:$8 sm:$0xf] %vm124, %v162
    %165 = vst.msk [vmem:[%s163] ss:$8 sm:$0x0] %vm124, %v162
    %s166 = sld [smem:[#allocation4 + $0x2]]
    %s167 = sshra.s32 %s166, 3
    %s168 = sand.u32 %s166, 7
    %s169 = sshra.s32 %s166, 3
    %s170 = sand.u32 %s166, 7
    %s171 = smul.u32 %s167, 4
    %s172 = smul.u32 %s171, 8
    %s173 = sadd.s32 %s172, %s170
    %s174 = scalar_lea.vmem [#allocation5], %s173
    %v175 = vld [vmem:[%s174] ss:$8 sm:$0xf]
    %s176 = scalar_lea.vmem [#allocation2], 64
    %177 = vst.msk [vmem:[%s176] ss:$8 sm:$0xf] %vm124, %v175
    %178 = vst.msk [vmem:[%s176] ss:$8 sm:$0x0] %vm124, %v175
    %s179 = sld [smem:[#allocation4 + $0x82]]
    %s180 = sshra.s32 %s179, 3
    %s181 = sand.u32 %s179, 7
    %s182 = sshra.s32 %s179, 3
    %s183 = sand.u32 %s179, 7
    %s184 = smul.u32 %s180, 4
    %s185 = smul.u32 %s184, 8
    %s186 = sadd.s32 %s185, %s183
    %s187 = scalar_lea.vmem [#allocation5], %s186
    %v188 = vld [vmem:[%s187] ss:$8 sm:$0xf]
    %s189 = scalar_lea.vmem [#allocation2], 65
    %190 = vst.msk [vmem:[%s189] ss:$8 sm:$0xf] %vm124, %v188
    %191 = vst.msk [vmem:[%s189] ss:$8 sm:$0x0] %vm124, %v188
    %s192 = sld [smem:[#allocation4 + $0x3]]
    %s193 = sshra.s32 %s192, 3
    %s194 = sand.u32 %s192, 7
    %s195 = sshra.s32 %s192, 3
    %s196 = sand.u32 %s192, 7
    %s197 = smul.u32 %s193, 4
    %s198 = smul.u32 %s197, 8
    %s199 = sadd.s32 %s198, %s196
    %s200 = scalar_lea.vmem [#allocation5], %s199
    %v201 = vld [vmem:[%s200] ss:$8 sm:$0xf]
    %s202 = scalar_lea.vmem [#allocation2], 96
    %203 = vst.msk [vmem:[%s202] ss:$8 sm:$0xf] %vm124, %v201
    %204 = vst.msk [vmem:[%s202] ss:$8 sm:$0x0] %vm124, %v201
    %s205 = sld [smem:[#allocation4 + $0x83]]
    %s206 = sshra.s32 %s205, 3
    %s207 = sand.u32 %s205, 7
    %s208 = sshra.s32 %s205, 3
    %s209 = sand.u32 %s205, 7
    %s210 = smul.u32 %s206, 4
    %s211 = smul.u32 %s210, 8
    %s212 = sadd.s32 %s211, %s209
    %s213 = scalar_lea.vmem [#allocation5], %s212
    %v214 = vld [vmem:[%s213] ss:$8 sm:$0xf]
    %s215 = scalar_lea.vmem [#allocation2], 97
    %216 = vst.msk [vmem:[%s215] ss:$8 sm:$0xf] %vm124, %v214
    %217 = vst.msk [vmem:[%s215] ss:$8 sm:$0x0] %vm124, %v214
    %s218 = sld [smem:[#allocation4 + $0x4]]
    %s219 = sshra.s32 %s218, 3
    %s220 = sand.u32 %s218, 7
    %s221 = sshra.s32 %s218, 3
    %s222 = sand.u32 %s218, 7
    %s223 = smul.u32 %s219, 4
    %s224 = smul.u32 %s223, 8
    %s225 = sadd.s32 %s224, %s222
    %s226 = scalar_lea.vmem [#allocation5], %s225
    %v227 = vld [vmem:[%s226] ss:$8 sm:$0xf]
    %s228 = scalar_lea.vmem [#allocation2], 128
    %229 = vst.msk [vmem:[%s228] ss:$8 sm:$0xf] %vm124, %v227
    %230 = vst.msk [vmem:[%s228] ss:$8 sm:$0x0] %vm124, %v227
    %s231 = sld [smem:[#allocation4 + $0x84]]
    %s232 = sshra.s32 %s231, 3
    %s233 = sand.u32 %s231, 7
    %s234 = sshra.s32 %s231, 3
    %s235 = sand.u32 %s231, 7
    %s236 = smul.u32 %s232, 4
    %s237 = smul.u32 %s236, 8
    %s238 = sadd.s32 %s237, %s235
    %s239 = scalar_lea.vmem [#allocation5], %s238
    %v240 = vld [vmem:[%s239] ss:$8 sm:$0xf]
    %s241 = scalar_lea.vmem [#allocation2], 129
    %242 = vst.msk [vmem:[%s241] ss:$8 sm:$0xf] %vm124, %v240
    %243 = vst.msk [vmem:[%s241] ss:$8 sm:$0x0] %vm124, %v240
    %s244 = sld [smem:[#allocation4 + $0x5]]
    %s245 = sshra.s32 %s244, 3
    %s246 = sand.u32 %s244, 7
    %s247 = sshra.s32 %s244, 3
    %s248 = sand.u32 %s244, 7
    %s249 = smul.u32 %s245, 4
    %s250 = smul.u32 %s249, 8
    %s251 = sadd.s32 %s250, %s248
    %s252 = scalar_lea.vmem [#allocation5], %s251
    %v253 = vld [vmem:[%s252] ss:$8 sm:$0xf]
    %s254 = scalar_lea.vmem [#allocation2], 160
    %255 = vst.msk [vmem:[%s254] ss:$8 sm:$0xf] %vm124, %v253
    %256 = vst.msk [vmem:[%s254] ss:$8 sm:$0x0] %vm124, %v253
    %s257 = sld [smem:[#allocation4 + $0x85]]
    %s258 = sshra.s32 %s257, 3
    %s259 = sand.u32 %s257, 7
    %s260 = sshra.s32 %s257, 3
    %s261 = sand.u32 %s257, 7
    %s262 = smul.u32 %s258, 4
    %s263 = smul.u32 %s262, 8
    %s264 = sadd.s32 %s263, %s261
    %s265 = scalar_lea.vmem [#allocation5], %s264
    %v266 = vld [vmem:[%s265] ss:$8 sm:$0xf]
    %s267 = scalar_lea.vmem [#allocation2], 161
    %268 = vst.msk [vmem:[%s267] ss:$8 sm:$0xf] %vm124, %v266
    %269 = vst.msk [vmem:[%s267] ss:$8 sm:$0x0] %vm124, %v266
    %s270 = sld [smem:[#allocation4 + $0x6]]
    %s271 = sshra.s32 %s270, 3
    %s272 = sand.u32 %s270, 7
    %s273 = sshra.s32 %s270, 3
    %s274 = sand.u32 %s270, 7
    %s275 = smul.u32 %s271, 4
    %s276 = smul.u32 %s275, 8
    %s277 = sadd.s32 %s276, %s274
    %s278 = scalar_lea.vmem [#allocation5], %s277
    %v279 = vld [vmem:[%s278] ss:$8 sm:$0xf]
    %s280 = scalar_lea.vmem [#allocation2], 192
    %281 = vst.msk [vmem:[%s280] ss:$8 sm:$0xf] %vm124, %v279
    %282 = vst.msk [vmem:[%s280] ss:$8 sm:$0x0] %vm124, %v279
    %s283 = sld [smem:[#allocation4 + $0x86]]
    %s284 = sshra.s32 %s283, 3
    %s285 = sand.u32 %s283, 7
    %s286 = sshra.s32 %s283, 3
    %s287 = sand.u32 %s283, 7
    %s288 = smul.u32 %s284, 4
    %s289 = smul.u32 %s288, 8
    %s290 = sadd.s32 %s289, %s287
    %s291 = scalar_lea.vmem [#allocation5], %s290
    %v292 = vld [vmem:[%s291] ss:$8 sm:$0xf]
    %s293 = scalar_lea.vmem [#allocation2], 193
    %294 = vst.msk [vmem:[%s293] ss:$8 sm:$0xf] %vm124, %v292
    %295 = vst.msk [vmem:[%s293] ss:$8 sm:$0x0] %vm124, %v292
    %s296 = sld [smem:[#allocation4 + $0x7]]
    %s297 = sshra.s32 %s296, 3
    %s298 = sand.u32 %s296, 7
    %s299 = sshra.s32 %s296, 3
    %s300 = sand.u32 %s296, 7
    %s301 = smul.u32 %s297, 4
    %s302 = smul.u32 %s301, 8
    %s303 = sadd.s32 %s302, %s300
    %s304 = scalar_lea.vmem [#allocation5], %s303
    %v305 = vld [vmem:[%s304] ss:$8 sm:$0xf]
    %s306 = scalar_lea.vmem [#allocation2], 224
    %307 = vst.msk [vmem:[%s306] ss:$8 sm:$0xf] %vm124, %v305
    %308 = vst.msk [vmem:[%s306] ss:$8 sm:$0x0] %vm124, %v305
    %s309 = sld [smem:[#allocation4 + $0x87]]
    %s310 = sshra.s32 %s309, 3
    %s311 = sand.u32 %s309, 7
    %s312 = sshra.s32 %s309, 3
    %s313 = sand.u32 %s309, 7
    %s314 = smul.u32 %s310, 4
    %s315 = smul.u32 %s314, 8
    %s316 = sadd.s32 %s315, %s313
    %s317 = scalar_lea.vmem [#allocation5], %s316
    %v318 = vld [vmem:[%s317] ss:$8 sm:$0xf]
    %s319 = scalar_lea.vmem [#allocation2], 225
    %320 = vst.msk [vmem:[%s319] ss:$8 sm:$0xf] %vm124, %v318
    %321 = vst.msk [vmem:[%s319] ss:$8 sm:$0x0] %vm124, %v318
    %v322 = vld [vmem:[%s3] sm:$0xff]
    %v323 = vld [vmem:[%s4] sm:$0xff]
    %v324 = vld [vmem:[#allocation2] sm:$0xff]
    %v325 = vld [vmem:[#allocation2 + $0x8] sm:$0xff]
    %v326 = vld [vmem:[#allocation2 + $0x10] sm:$0xff]
    %v327 = vld [vmem:[#allocation2 + $0x18] sm:$0xff]
    %v328 = vpack.c.bf16 %v322, %v322
    %v329 = vld [vmem:[#allocation7] sm:$0xff]
    %v330 = vld [vmem:[#allocation7 + $0x8] sm:$0xff]
    %v331 = vld [vmem:[#allocation7 + $0x10] sm:$0xff]
    %v332 = vld [vmem:[#allocation7 + $0x18] sm:$0xff]
    %v333 = vld [vmem:[#allocation7 + $0x20] sm:$0xff]
    %v334 = vld [vmem:[#allocation7 + $0x28] sm:$0xff]
    %v335 = vld [vmem:[#allocation7 + $0x30] sm:$0xff]
    %v336 = vld [vmem:[#allocation7 + $0x38] sm:$0xff]
    %v337 = vld [vmem:[#allocation7 + $0x40] sm:$0xff]
    %v338 = vld [vmem:[#allocation7 + $0x48] sm:$0xff]
    %v339 = vld [vmem:[#allocation7 + $0x50] sm:$0xff]
    %v340 = vld [vmem:[#allocation7 + $0x58] sm:$0xff]
    %v341 = vld [vmem:[#allocation7 + $0x60] sm:$0xff]
    %v342 = vld [vmem:[#allocation7 + $0x68] sm:$0xff]
    %v343 = vld [vmem:[#allocation7 + $0x70] sm:$0xff]
    %v344 = vld [vmem:[#allocation7 + $0x78] sm:$0xff]
    %v345 = vld [vmem:[#allocation7 + $0x80] sm:$0xff]
    %v346 = vld [vmem:[#allocation7 + $0x88] sm:$0xff]
    %v347 = vld [vmem:[#allocation7 + $0x90] sm:$0xff]
    %v348 = vld [vmem:[#allocation7 + $0x98] sm:$0xff]
    %v349 = vld [vmem:[#allocation7 + $0xa0] sm:$0xff]
    %v350 = vld [vmem:[#allocation7 + $0xa8] sm:$0xff]
    %v351 = vld [vmem:[#allocation7 + $0xb0] sm:$0xff]
    %v352 = vld [vmem:[#allocation7 + $0xb8] sm:$0xff]
    %v353 = vld [vmem:[#allocation7 + $0xc0] sm:$0xff]
    %v354 = vld [vmem:[#allocation7 + $0xc8] sm:$0xff]
    %v355 = vld [vmem:[#allocation7 + $0xd0] sm:$0xff]
    %v356 = vld [vmem:[#allocation7 + $0xd8] sm:$0xff]
    %v357 = vld [vmem:[#allocation7 + $0xe0] sm:$0xff]
    %v358 = vld [vmem:[#allocation7 + $0xe8] sm:$0xff]
    %v359 = vld [vmem:[#allocation7 + $0xf0] sm:$0xff]
    %v360 = vld [vmem:[#allocation7 + $0xf8] sm:$0xff]
    %v393 = vunpack.c.l.b16 %v329
    %v394 = vunpack.c.h.b16 %v329
    %v395 = vunpack.c.l.b16 %v330
    %v396 = vunpack.c.h.b16 %v330
    %v397 = vunpack.c.l.b16 %v331
    %v398 = vunpack.c.h.b16 %v331
    %v399 = vunpack.c.l.b16 %v332
    %v400 = vunpack.c.h.b16 %v332
    %v401 = vunpack.c.l.b16 %v333
    %v402 = vunpack.c.h.b16 %v333
    %v403 = vunpack.c.l.b16 %v334
    %v404 = vunpack.c.h.b16 %v334
    %v405 = vunpack.c.l.b16 %v335
    %v406 = vunpack.c.h.b16 %v335
    %v407 = vunpack.c.l.b16 %v336
    %v408 = vunpack.c.h.b16 %v336
    %v409 = vunpack.c.l.b16 %v337
    %v410 = vunpack.c.h.b16 %v337
    %v411 = vunpack.c.l.b16 %v338
    %v412 = vunpack.c.h.b16 %v338
    %v413 = vunpack.c.l.b16 %v339
    %v414 = vunpack.c.h.b16 %v339
    %v415 = vunpack.c.l.b16 %v340
    %v416 = vunpack.c.h.b16 %v340
    %v417 = vunpack.c.l.b16 %v341
    %v418 = vunpack.c.h.b16 %v341
    %v419 = vunpack.c.l.b16 %v342
    %v420 = vunpack.c.h.b16 %v342
    %v421 = vunpack.c.l.b16 %v343
    %v422 = vunpack.c.h.b16 %v343
    %v423 = vunpack.c.l.b16 %v344
    %v424 = vunpack.c.h.b16 %v344
    %v425 = vunpack.c.l.b16 %v345
    %v426 = vunpack.c.h.b16 %v345
    %v427 = vunpack.c.l.b16 %v346
    %v428 = vunpack.c.h.b16 %v346
    %v429 = vunpack.c.l.b16 %v347
    %v430 = vunpack.c.h.b16 %v347
    %v431 = vunpack.c.l.b16 %v348
    %v432 = vunpack.c.h.b16 %v348
    %v433 = vunpack.c.l.b16 %v349
    %v434 = vunpack.c.h.b16 %v349
    %v435 = vunpack.c.l.b16 %v350
    %v436 = vunpack.c.h.b16 %v350
    %v437 = vunpack.c.l.b16 %v351
    %v438 = vunpack.c.h.b16 %v351
    %v439 = vunpack.c.l.b16 %v352
    %v440 = vunpack.c.h.b16 %v352
    %v441 = vunpack.c.l.b16 %v353
    %v442 = vunpack.c.h.b16 %v353
    %v443 = vunpack.c.l.b16 %v354
    %v444 = vunpack.c.h.b16 %v354
    %v445 = vunpack.c.l.b16 %v355
    %v446 = vunpack.c.h.b16 %v355
    %v447 = vunpack.c.l.b16 %v356
    %v448 = vunpack.c.h.b16 %v356
    %v449 = vunpack.c.l.b16 %v357
    %v450 = vunpack.c.h.b16 %v357
    %v451 = vunpack.c.l.b16 %v358
    %v452 = vunpack.c.h.b16 %v358
    %v453 = vunpack.c.l.b16 %v359
    %v454 = vunpack.c.h.b16 %v359
    %v455 = vunpack.c.l.b16 %v360
    %v456 = vunpack.c.h.b16 %v360
    %v457 = vpack.c.b16 %v397, %v393
    %v458 = vpack.c.b16 %v398, %v394
    %v459 = vpack.c.b16 %v399, %v395
    %v460 = vpack.c.b16 %v400, %v396
    %v461 = vpack.c.b16 %v405, %v401
    %v462 = vpack.c.b16 %v406, %v402
    %v463 = vpack.c.b16 %v407, %v403
    %v464 = vpack.c.b16 %v408, %v404
    %v465 = vpack.c.b16 %v413, %v409
    %v466 = vpack.c.b16 %v414, %v410
    %v467 = vpack.c.b16 %v415, %v411
    %v468 = vpack.c.b16 %v416, %v412
    %v469 = vpack.c.b16 %v421, %v417
    %v470 = vpack.c.b16 %v422, %v418
    %v471 = vpack.c.b16 %v423, %v419
    %v472 = vpack.c.b16 %v424, %v420
    %v473 = vpack.c.b16 %v429, %v425
    %v474 = vpack.c.b16 %v430, %v426
    %v475 = vpack.c.b16 %v431, %v427
    %v476 = vpack.c.b16 %v432, %v428
    %v477 = vpack.c.b16 %v437, %v433
    %v478 = vpack.c.b16 %v438, %v434
    %v479 = vpack.c.b16 %v439, %v435
    %v480 = vpack.c.b16 %v440, %v436
    %v481 = vpack.c.b16 %v445, %v441
    %v482 = vpack.c.b16 %v446, %v442
    %v483 = vpack.c.b16 %v447, %v443
    %v484 = vpack.c.b16 %v448, %v444
    %v485 = vpack.c.b16 %v453, %v449
    %v486 = vpack.c.b16 %v454, %v450
    %v487 = vpack.c.b16 %v455, %v451
    %v488 = vpack.c.b16 %v456, %v452
    %521 = vmatpush.bf16.msra.mxu0 %v485
    %522 = vmatpush.bf16.msra.mxu0 %v481
    %523 = vmatpush.bf16.msra.mxu0 %v477
    %524 = vmatpush.bf16.msra.mxu0 %v473
    %525 = vmatpush.bf16.msra.mxu0 %v469
    %526 = vmatpush.bf16.msra.mxu0 %v465
    %527 = vmatpush.bf16.msra.mxu0 %v461
    %528 = vmatpush.bf16.msra.mxu0 %v457
    %529 = vmatmul.bf16.gmra.mxu0 %v328
    %v530 = vpop.f32.mrf.mxu0
    %v531 = vadd.f32 0.0, %v530
    %v532 = vpop.f32.mrf.mxu0
    %533 = vdwg.mxu0
    %534 = vmatpush.bf16.msra.mxu0 %v486
    %535 = vmatpush.bf16.msra.mxu0 %v482
    %536 = vmatpush.bf16.msra.mxu0 %v478
    %537 = vmatpush.bf16.msra.mxu0 %v474
    %538 = vmatpush.bf16.msra.mxu0 %v470
    %539 = vmatpush.bf16.msra.mxu0 %v466
    %540 = vmatpush.bf16.msra.mxu0 %v462
    %541 = vmatpush.bf16.msra.mxu0 %v458
    %542 = vmatmul.bf16.gmra.mxu0 %v328
    %v543 = vpop.f32.mrf.mxu0
    %v544 = vadd.f32 0.0, %v543
    %v545 = vpop.f32.mrf.mxu0
    %546 = vdwg.mxu0
    %547 = vmatpush.bf16.msra.mxu0 %v487
    %548 = vmatpush.bf16.msra.mxu0 %v483
    %549 = vmatpush.bf16.msra.mxu0 %v479
    %550 = vmatpush.bf16.msra.mxu0 %v475
    %551 = vmatpush.bf16.msra.mxu0 %v471
    %552 = vmatpush.bf16.msra.mxu0 %v467
    %553 = vmatpush.bf16.msra.mxu0 %v463
    %554 = vmatpush.bf16.msra.mxu0 %v459
    %555 = vmatmul.bf16.gmra.mxu0 %v328
    %v556 = vpop.f32.mrf.mxu0
    %v557 = vadd.f32 0.0, %v556
    %v558 = vpop.f32.mrf.mxu0
    %559 = vdwg.mxu0
    %560 = vmatpush.bf16.msra.mxu0 %v488
    %561 = vmatpush.bf16.msra.mxu0 %v484
    %562 = vmatpush.bf16.msra.mxu0 %v480
    %563 = vmatpush.bf16.msra.mxu0 %v476
    %564 = vmatpush.bf16.msra.mxu0 %v472
    %565 = vmatpush.bf16.msra.mxu0 %v468
    %566 = vmatpush.bf16.msra.mxu0 %v464
    %567 = vmatpush.bf16.msra.mxu0 %v460
    %568 = vmatmul.bf16.gmra.mxu0 %v328
    %v569 = vpop.f32.mrf.mxu0
    %v570 = vadd.f32 0.0, %v569
    %v571 = vpop.f32.mrf.mxu0
    %572 = vdwg.mxu0
    %v573 = vadd.f32 %v324, %v531
    %v574 = vadd.f32 %v325, %v544
    %v575 = vadd.f32 %v326, %v557
    %v576 = vadd.f32 %v327, %v570
    %v577 = vxor.u32 %v573, 2147483648
    %v578 = vmul.f32 %v577, 1.442695
    %v579 = vpow.pop %v578
    %v580 = vadd.f32 %v579, 1.0
    %v581 = vrcp.pop %v580
    %v582 = vmul.f32 %v580, %v581
    %v583 = vsub.f32 1.0, %v582
    %v584 = vmul.f32 %v581, %v583
    %v585 = vadd.f32 %v581, %v584
    %vm586 = vweird.f32 %v580
    %vm587 = vweird.f32 %v581
    %vm588 = vmor %vm586, %vm587
    %v589 = vsel %vm588, %v581, %v585
    %v590 = vand.u32 2147483647, %v580
    %vm591 = vcmp.eq.f32.partialorder %v590, 8.507059e+37
    %v592 = vand.u32 %v580, 2147483648
    %v593 = vor.u32 1.1754944e-38, %v592
    %v594 = vsel %vm591, %v593, %v589
    %v595 = vmul.f32 1.0, %v594
    %v596 = vxor.u32 %v574, 2147483648
    %v597 = vmul.f32 %v596, 1.442695
    %v598 = vpow.pop %v597
    %v599 = vadd.f32 %v598, 1.0
    %v600 = vrcp.pop %v599
    %v601 = vmul.f32 %v599, %v600
    %v602 = vsub.f32 1.0, %v601
    %v603 = vmul.f32 %v600, %v602
    %v604 = vadd.f32 %v600, %v603
    %vm605 = vweird.f32 %v599
    %vm606 = vweird.f32 %v600
    %vm607 = vmor %vm605, %vm606
    %v608 = vsel %vm607, %v600, %v604
    %v609 = vand.u32 2147483647, %v599
    %vm610 = vcmp.eq.f32.partialorder %v609, 8.507059e+37
    %v611 = vand.u32 %v599, 2147483648
    %v612 = vor.u32 1.1754944e-38, %v611
    %v613 = vsel %vm610, %v612, %v608
    %v614 = vmul.f32 1.0, %v613
    %v615 = vtanh.pop %v575
    %v616 = vxor.u32 %v576, 2147483648
    %v617 = vmul.f32 %v616, 1.442695
    %v618 = vpow.pop %v617
    %v619 = vadd.f32 %v618, 1.0
    %v620 = vrcp.pop %v619
    %v621 = vmul.f32 %v619, %v620
    %v622 = vsub.f32 1.0, %v621
    %v623 = vmul.f32 %v620, %v622
    %v624 = vadd.f32 %v620, %v623
    %vm625 = vweird.f32 %v619
    %vm626 = vweird.f32 %v620
    %vm627 = vmor %vm625, %vm626
    %v628 = vsel %vm627, %v620, %v624
    %v629 = vand.u32 2147483647, %v619
    %vm630 = vcmp.eq.f32.partialorder %v629, 8.507059e+37
    %v631 = vand.u32 %v619, 2147483648
    %v632 = vor.u32 1.1754944e-38, %v631
    %v633 = vsel %vm630, %v632, %v628
    %v634 = vmul.f32 1.0, %v633
    %v635 = vmul.f32 %v614, %v323
    %v636 = vmul.f32 %v595, %v615
    %v637 = vadd.f32 %v635, %v636
    %v638 = vtanh.pop %v637
    %v639 = vmul.f32 %v634, %v638
    %v640 = vld [vmem:[#allocation2 + $0x20] sm:$0xff]
    %v641 = vld [vmem:[#allocation2 + $0x28] sm:$0xff]
    %v642 = vld [vmem:[#allocation2 + $0x30] sm:$0xff]
    %v643 = vld [vmem:[#allocation2 + $0x38] sm:$0xff]
    %v644 = vpack.c.bf16 %v639, %v639
    %645 = vmatpush.bf16.msra.mxu0 %v485
    %646 = vmatpush.bf16.msra.mxu0 %v481
    %647 = vmatpush.bf16.msra.mxu0 %v477
    %648 = vmatpush.bf16.msra.mxu0 %v473
    %649 = vmatpush.bf16.msra.mxu0 %v469
    %650 = vmatpush.bf16.msra.mxu0 %v465
    %651 = vmatpush.bf16.msra.mxu0 %v461
    %652 = vmatpush.bf16.msra.mxu0 %v457
    %653 = vmatmul.bf16.gmra.mxu0 %v644
    %v654 = vpop.f32.mrf.mxu0
    %v655 = vadd.f32 0.0, %v654
    %v656 = vpop.f32.mrf.mxu0
    %657 = vdwg.mxu0
    %658 = vmatpush.bf16.msra.mxu0 %v486
    %659 = vmatpush.bf16.msra.mxu0 %v482
    %660 = vmatpush.bf16.msra.mxu0 %v478
    %661 = vmatpush.bf16.msra.mxu0 %v474
    %662 = vmatpush.bf16.msra.mxu0 %v470
    %663 = vmatpush.bf16.msra.mxu0 %v466
    %664 = vmatpush.bf16.msra.mxu0 %v462
    %665 = vmatpush.bf16.msra.mxu0 %v458
    %666 = vmatmul.bf16.gmra.mxu0 %v644
    %v667 = vpop.f32.mrf.mxu0
    %v668 = vadd.f32 0.0, %v667
    %v669 = vpop.f32.mrf.mxu0
    %670 = vdwg.mxu0
    %671 = vmatpush.bf16.msra.mxu0 %v487
    %672 = vmatpush.bf16.msra.mxu0 %v483
    %673 = vmatpush.bf16.msra.mxu0 %v479
    %674 = vmatpush.bf16.msra.mxu0 %v475
    %675 = vmatpush.bf16.msra.mxu0 %v471
    %676 = vmatpush.bf16.msra.mxu0 %v467
    %677 = vmatpush.bf16.msra.mxu0 %v463
    %678 = vmatpush.bf16.msra.mxu0 %v459
    %679 = vmatmul.bf16.gmra.mxu0 %v644
    %v680 = vpop.f32.mrf.mxu0
    %v681 = vadd.f32 0.0, %v680
    %v682 = vpop.f32.mrf.mxu0
    %683 = vdwg.mxu0
    %684 = vmatpush.bf16.msra.mxu0 %v488
    %685 = vmatpush.bf16.msra.mxu0 %v484
    %686 = vmatpush.bf16.msra.mxu0 %v480
    %687 = vmatpush.bf16.msra.mxu0 %v476
    %688 = vmatpush.bf16.msra.mxu0 %v472
    %689 = vmatpush.bf16.msra.mxu0 %v468
    %690 = vmatpush.bf16.msra.mxu0 %v464
    %691 = vmatpush.bf16.msra.mxu0 %v460
    %692 = vmatmul.bf16.gmra.mxu0 %v644
    %v693 = vpop.f32.mrf.mxu0
    %v694 = vadd.f32 0.0, %v693
    %v695 = vpop.f32.mrf.mxu0
    %696 = vdwg.mxu0
    %v697 = vadd.f32 %v640, %v655
    %v698 = vadd.f32 %v641, %v668
    %v699 = vadd.f32 %v642, %v681
    %v700 = vadd.f32 %v643, %v694
    %v701 = vxor.u32 %v697, 2147483648
    %v702 = vmul.f32 %v701, 1.442695
    %v703 = vpow.pop %v702
    %v704 = vadd.f32 %v703, 1.0
    %v705 = vrcp.pop %v704
    %v706 = vmul.f32 %v704, %v705
    %v707 = vsub.f32 1.0, %v706
    %v708 = vmul.f32 %v705, %v707
    %v709 = vadd.f32 %v705, %v708
    %vm710 = vweird.f32 %v704
    %vm711 = vweird.f32 %v705
    %vm712 = vmor %vm710, %vm711
    %v713 = vsel %vm712, %v705, %v709
    %v714 = vand.u32 2147483647, %v704
    %vm715 = vcmp.eq.f32.partialorder %v714, 8.507059e+37
    %v716 = vand.u32 %v704, 2147483648
    %v717 = vor.u32 1.1754944e-38, %v716
    %v718 = vsel %vm715, %v717, %v713
    %v719 = vmul.f32 1.0, %v718
    %v720 = vxor.u32 %v698, 2147483648
    %v721 = vmul.f32 %v720, 1.442695
    %v722 = vpow.pop %v721
    %v723 = vadd.f32 %v722, 1.0
    %v724 = vrcp.pop %v723
    %v725 = vmul.f32 %v723, %v724
    %v726 = vsub.f32 1.0, %v725
    %v727 = vmul.f32 %v724, %v726
    %v728 = vadd.f32 %v724, %v727
    %vm729 = vweird.f32 %v723
    %vm730 = vweird.f32 %v724
    %vm731 = vmor %vm729, %vm730
    %v732 = vsel %vm731, %v724, %v728
    %v733 = vand.u32 2147483647, %v723
    %vm734 = vcmp.eq.f32.partialorder %v733, 8.507059e+37
    %v735 = vand.u32 %v723, 2147483648
    %v736 = vor.u32 1.1754944e-38, %v735
    %v737 = vsel %vm734, %v736, %v732
    %v738 = vmul.f32 1.0, %v737
    %v739 = vtanh.pop %v699
    %v740 = vxor.u32 %v700, 2147483648
    %v741 = vmul.f32 %v740, 1.442695
    %v742 = vpow.pop %v741
    %v743 = vadd.f32 %v742, 1.0
    %v744 = vrcp.pop %v743
    %v745 = vmul.f32 %v743, %v744
    %v746 = vsub.f32 1.0, %v745
    %v747 = vmul.f32 %v744, %v746
    %v748 = vadd.f32 %v744, %v747
    %vm749 = vweird.f32 %v743
    %vm750 = vweird.f32 %v744
    %vm751 = vmor %vm749, %vm750
    %v752 = vsel %vm751, %v744, %v748
    %v753 = vand.u32 2147483647, %v743
    %vm754 = vcmp.eq.f32.partialorder %v753, 8.507059e+37
    %v755 = vand.u32 %v743, 2147483648
    %v756 = vor.u32 1.1754944e-38, %v755
    %v757 = vsel %vm754, %v756, %v752
    %v758 = vmul.f32 1.0, %v757
    %v759 = vmul.f32 %v738, %v637
    %v760 = vmul.f32 %v719, %v739
    %v761 = vadd.f32 %v759, %v760
    %v762 = vtanh.pop %v761
    %v763 = vmul.f32 %v758, %v762
    %v764 = vld [vmem:[#allocation2 + $0x40] sm:$0xff]
    %v765 = vld [vmem:[#allocation2 + $0x48] sm:$0xff]
    %v766 = vld [vmem:[#allocation2 + $0x50] sm:$0xff]
    %v767 = vld [vmem:[#allocation2 + $0x58] sm:$0xff]
    %v768 = vpack.c.bf16 %v763, %v763
    %769 = vmatpush.bf16.msra.mxu0 %v485
    %770 = vmatpush.bf16.msra.mxu0 %v481
    %771 = vmatpush.bf16.msra.mxu0 %v477
    %772 = vmatpush.bf16.msra.mxu0 %v473
    %773 = vmatpush.bf16.msra.mxu0 %v469
    %774 = vmatpush.bf16.msra.mxu0 %v465
    %775 = vmatpush.bf16.msra.mxu0 %v461
    %776 = vmatpush.bf16.msra.mxu0 %v457
    %777 = vmatmul.bf16.gmra.mxu0 %v768
    %v778 = vpop.f32.mrf.mxu0
    %v779 = vadd.f32 0.0, %v778
    %v780 = vpop.f32.mrf.mxu0
    %781 = vdwg.mxu0
    %782 = vmatpush.bf16.msra.mxu0 %v486
    %783 = vmatpush.bf16.msra.mxu0 %v482
    %784 = vmatpush.bf16.msra.mxu0 %v478
    %785 = vmatpush.bf16.msra.mxu0 %v474
    %786 = vmatpush.bf16.msra.mxu0 %v470
    %787 = vmatpush.bf16.msra.mxu0 %v466
    %788 = vmatpush.bf16.msra.mxu0 %v462
    %789 = vmatpush.bf16.msra.mxu0 %v458
    %790 = vmatmul.bf16.gmra.mxu0 %v768
    %v791 = vpop.f32.mrf.mxu0
    %v792 = vadd.f32 0.0, %v791
    %v793 = vpop.f32.mrf.mxu0
    %794 = vdwg.mxu0
    %795 = vmatpush.bf16.msra.mxu0 %v487
    %796 = vmatpush.bf16.msra.mxu0 %v483
    %797 = vmatpush.bf16.msra.mxu0 %v479
    %798 = vmatpush.bf16.msra.mxu0 %v475
    %799 = vmatpush.bf16.msra.mxu0 %v471
    %800 = vmatpush.bf16.msra.mxu0 %v467
    %801 = vmatpush.bf16.msra.mxu0 %v463
    %802 = vmatpush.bf16.msra.mxu0 %v459
    %803 = vmatmul.bf16.gmra.mxu0 %v768
    %v804 = vpop.f32.mrf.mxu0
    %v805 = vadd.f32 0.0, %v804
    %v806 = vpop.f32.mrf.mxu0
    %807 = vdwg.mxu0
    %808 = vmatpush.bf16.msra.mxu0 %v488
    %809 = vmatpush.bf16.msra.mxu0 %v484
    %810 = vmatpush.bf16.msra.mxu0 %v480
    %811 = vmatpush.bf16.msra.mxu0 %v476
    %812 = vmatpush.bf16.msra.mxu0 %v472
    %813 = vmatpush.bf16.msra.mxu0 %v468
    %814 = vmatpush.bf16.msra.mxu0 %v464
    %815 = vmatpush.bf16.msra.mxu0 %v460
    %816 = vmatmul.bf16.gmra.mxu0 %v768
    %v817 = vpop.f32.mrf.mxu0
    %v818 = vadd.f32 0.0, %v817
    %v819 = vpop.f32.mrf.mxu0
    %820 = vdwg.mxu0
    %v821 = vadd.f32 %v764, %v779
    %v822 = vadd.f32 %v765, %v792
    %v823 = vadd.f32 %v766, %v805
    %v824 = vadd.f32 %v767, %v818
    %v825 = vxor.u32 %v821, 2147483648
    %v826 = vmul.f32 %v825, 1.442695
    %v827 = vpow.pop %v826
    %v828 = vadd.f32 %v827, 1.0
    %v829 = vrcp.pop %v828
    %v830 = vmul.f32 %v828, %v829
    %v831 = vsub.f32 1.0, %v830
    %v832 = vmul.f32 %v829, %v831
    %v833 = vadd.f32 %v829, %v832
    %vm834 = vweird.f32 %v828
    %vm835 = vweird.f32 %v829
    %vm836 = vmor %vm834, %vm835
    %v837 = vsel %vm836, %v829, %v833
    %v838 = vand.u32 2147483647, %v828
    %vm839 = vcmp.eq.f32.partialorder %v838, 8.507059e+37
    %v840 = vand.u32 %v828, 2147483648
    %v841 = vor.u32 1.1754944e-38, %v840
    %v842 = vsel %vm839, %v841, %v837
    %v843 = vmul.f32 1.0, %v842
    %v844 = vxor.u32 %v822, 2147483648
    %v845 = vmul.f32 %v844, 1.442695
    %v846 = vpow.pop %v845
    %v847 = vadd.f32 %v846, 1.0
    %v848 = vrcp.pop %v847
    %v849 = vmul.f32 %v847, %v848
    %v850 = vsub.f32 1.0, %v849
    %v851 = vmul.f32 %v848, %v850
    %v852 = vadd.f32 %v848, %v851
    %vm853 = vweird.f32 %v847
    %vm854 = vweird.f32 %v848
    %vm855 = vmor %vm853, %vm854
    %v856 = vsel %vm855, %v848, %v852
    %v857 = vand.u32 2147483647, %v847
    %vm858 = vcmp.eq.f32.partialorder %v857, 8.507059e+37
    %v859 = vand.u32 %v847, 2147483648
    %v860 = vor.u32 1.1754944e-38, %v859
    %v861 = vsel %vm858, %v860, %v856
    %v862 = vmul.f32 1.0, %v861
    %v863 = vtanh.pop %v823
    %v864 = vxor.u32 %v824, 2147483648
    %v865 = vmul.f32 %v864, 1.442695
    %v866 = vpow.pop %v865
    %v867 = vadd.f32 %v866, 1.0
    %v868 = vrcp.pop %v867
    %v869 = vmul.f32 %v867, %v868
    %v870 = vsub.f32 1.0, %v869
    %v871 = vmul.f32 %v868, %v870
    %v872 = vadd.f32 %v868, %v871
    %vm873 = vweird.f32 %v867
    %vm874 = vweird.f32 %v868
    %vm875 = vmor %vm873, %vm874
    %v876 = vsel %vm875, %v868, %v872
    %v877 = vand.u32 2147483647, %v867
    %vm878 = vcmp.eq.f32.partialorder %v877, 8.507059e+37
    %v879 = vand.u32 %v867, 2147483648
    %v880 = vor.u32 1.1754944e-38, %v879
    %v881 = vsel %vm878, %v880, %v876
    %v882 = vmul.f32 1.0, %v881
    %v883 = vmul.f32 %v862, %v761
    %v884 = vmul.f32 %v843, %v863
    %v885 = vadd.f32 %v883, %v884
    %v886 = vtanh.pop %v885
    %v887 = vmul.f32 %v882, %v886
    %v888 = vld [vmem:[#allocation2 + $0x60] sm:$0xff]
    %v889 = vld [vmem:[#allocation2 + $0x68] sm:$0xff]
    %v890 = vld [vmem:[#allocation2 + $0x70] sm:$0xff]
    %v891 = vld [vmem:[#allocation2 + $0x78] sm:$0xff]
    %v892 = vpack.c.bf16 %v887, %v887
    %893 = vmatpush.bf16.msra.mxu0 %v485
    %894 = vmatpush.bf16.msra.mxu0 %v481
    %895 = vmatpush.bf16.msra.mxu0 %v477
    %896 = vmatpush.bf16.msra.mxu0 %v473
    %897 = vmatpush.bf16.msra.mxu0 %v469
    %898 = vmatpush.bf16.msra.mxu0 %v465
    %899 = vmatpush.bf16.msra.mxu0 %v461
    %900 = vmatpush.bf16.msra.mxu0 %v457
    %901 = vmatmul.bf16.gmra.mxu0 %v892
    %v902 = vpop.f32.mrf.mxu0
    %v903 = vadd.f32 0.0, %v902
    %v904 = vpop.f32.mrf.mxu0
    %905 = vdwg.mxu0
    %906 = vmatpush.bf16.msra.mxu0 %v486
    %907 = vmatpush.bf16.msra.mxu0 %v482
    %908 = vmatpush.bf16.msra.mxu0 %v478
    %909 = vmatpush.bf16.msra.mxu0 %v474
    %910 = vmatpush.bf16.msra.mxu0 %v470
    %911 = vmatpush.bf16.msra.mxu0 %v466
    %912 = vmatpush.bf16.msra.mxu0 %v462
    %913 = vmatpush.bf16.msra.mxu0 %v458
    %914 = vmatmul.bf16.gmra.mxu0 %v892
    %v915 = vpop.f32.mrf.mxu0
    %v916 = vadd.f32 0.0, %v915
    %v917 = vpop.f32.mrf.mxu0
    %918 = vdwg.mxu0
    %919 = vmatpush.bf16.msra.mxu0 %v487
    %920 = vmatpush.bf16.msra.mxu0 %v483
    %921 = vmatpush.bf16.msra.mxu0 %v479
    %922 = vmatpush.bf16.msra.mxu0 %v475
    %923 = vmatpush.bf16.msra.mxu0 %v471
    %924 = vmatpush.bf16.msra.mxu0 %v467
    %925 = vmatpush.bf16.msra.mxu0 %v463
    %926 = vmatpush.bf16.msra.mxu0 %v459
    %927 = vmatmul.bf16.gmra.mxu0 %v892
    %v928 = vpop.f32.mrf.mxu0
    %v929 = vadd.f32 0.0, %v928
    %v930 = vpop.f32.mrf.mxu0
    %931 = vdwg.mxu0
    %932 = vmatpush.bf16.msra.mxu0 %v488
    %933 = vmatpush.bf16.msra.mxu0 %v484
    %934 = vmatpush.bf16.msra.mxu0 %v480
    %935 = vmatpush.bf16.msra.mxu0 %v476
    %936 = vmatpush.bf16.msra.mxu0 %v472
    %937 = vmatpush.bf16.msra.mxu0 %v468
    %938 = vmatpush.bf16.msra.mxu0 %v464
    %939 = vmatpush.bf16.msra.mxu0 %v460
    %940 = vmatmul.bf16.gmra.mxu0 %v892
    %v941 = vpop.f32.mrf.mxu0
    %v942 = vadd.f32 0.0, %v941
    %v943 = vpop.f32.mrf.mxu0
    %944 = vdwg.mxu0
    %v945 = vadd.f32 %v888, %v903
    %v946 = vadd.f32 %v889, %v916
    %v947 = vadd.f32 %v890, %v929
    %v948 = vadd.f32 %v891, %v942
    %v949 = vxor.u32 %v945, 2147483648
    %v950 = vmul.f32 %v949, 1.442695
    %v951 = vpow.pop %v950
    %v952 = vadd.f32 %v951, 1.0
    %v953 = vrcp.pop %v952
    %v954 = vmul.f32 %v952, %v953
    %v955 = vsub.f32 1.0, %v954
    %v956 = vmul.f32 %v953, %v955
    %v957 = vadd.f32 %v953, %v956
    %vm958 = vweird.f32 %v952
    %vm959 = vweird.f32 %v953
    %vm960 = vmor %vm958, %vm959
    %v961 = vsel %vm960, %v953, %v957
    %v962 = vand.u32 2147483647, %v952
    %vm963 = vcmp.eq.f32.partialorder %v962, 8.507059e+37
    %v964 = vand.u32 %v952, 2147483648
    %v965 = vor.u32 1.1754944e-38, %v964
    %v966 = vsel %vm963, %v965, %v961
    %v967 = vmul.f32 1.0, %v966
    %v968 = vxor.u32 %v946, 2147483648
    %v969 = vmul.f32 %v968, 1.442695
    %v970 = vpow.pop %v969
    %v971 = vadd.f32 %v970, 1.0
    %v972 = vrcp.pop %v971
    %v973 = vmul.f32 %v971, %v972
    %v974 = vsub.f32 1.0, %v973
    %v975 = vmul.f32 %v972, %v974
    %v976 = vadd.f32 %v972, %v975
    %vm977 = vweird.f32 %v971
    %vm978 = vweird.f32 %v972
    %vm979 = vmor %vm977, %vm978
    %v980 = vsel %vm979, %v972, %v976
    %v981 = vand.u32 2147483647, %v971
    %vm982 = vcmp.eq.f32.partialorder %v981, 8.507059e+37
    %v983 = vand.u32 %v971, 2147483648
    %v984 = vor.u32 1.1754944e-38, %v983
    %v985 = vsel %vm982, %v984, %v980
    %v986 = vmul.f32 1.0, %v985
    %v987 = vtanh.pop %v947
    %v988 = vxor.u32 %v948, 2147483648
    %v989 = vmul.f32 %v988, 1.442695
    %v990 = vpow.pop %v989
    %v991 = vadd.f32 %v990, 1.0
    %v992 = vrcp.pop %v991
    %v993 = vmul.f32 %v991, %v992
    %v994 = vsub.f32 1.0, %v993
    %v995 = vmul.f32 %v992, %v994
    %v996 = vadd.f32 %v992, %v995
    %vm997 = vweird.f32 %v991
    %vm998 = vweird.f32 %v992
    %vm999 = vmor %vm997, %vm998
    %v1000 = vsel %vm999, %v992, %v996
    %v1001 = vand.u32 2147483647, %v991
    %vm1002 = vcmp.eq.f32.partialorder %v1001, 8.507059e+37
    %v1003 = vand.u32 %v991, 2147483648
    %v1004 = vor.u32 1.1754944e-38, %v1003
    %v1005 = vsel %vm1002, %v1004, %v1000
    %v1006 = vmul.f32 1.0, %v1005
    %v1007 = vmul.f32 %v986, %v885
    %v1008 = vmul.f32 %v967, %v987
    %v1009 = vadd.f32 %v1007, %v1008
    %v1010 = vtanh.pop %v1009
    %v1011 = vmul.f32 %v1006, %v1010
    %v1012 = vld [vmem:[#allocation2 + $0x80] sm:$0xff]
    %v1013 = vld [vmem:[#allocation2 + $0x88] sm:$0xff]
    %v1014 = vld [vmem:[#allocation2 + $0x90] sm:$0xff]
    %v1015 = vld [vmem:[#allocation2 + $0x98] sm:$0xff]
    %v1016 = vpack.c.bf16 %v1011, %v1011
    %1017 = vmatpush.bf16.msra.mxu0 %v485
    %1018 = vmatpush.bf16.msra.mxu0 %v481
    %1019 = vmatpush.bf16.msra.mxu0 %v477
    %1020 = vmatpush.bf16.msra.mxu0 %v473
    %1021 = vmatpush.bf16.msra.mxu0 %v469
    %1022 = vmatpush.bf16.msra.mxu0 %v465
    %1023 = vmatpush.bf16.msra.mxu0 %v461
    %1024 = vmatpush.bf16.msra.mxu0 %v457
    %1025 = vmatmul.bf16.gmra.mxu0 %v1016
    %v1026 = vpop.f32.mrf.mxu0
    %v1027 = vadd.f32 0.0, %v1026
    %v1028 = vpop.f32.mrf.mxu0
    %1029 = vdwg.mxu0
    %1030 = vmatpush.bf16.msra.mxu0 %v486
    %1031 = vmatpush.bf16.msra.mxu0 %v482
    %1032 = vmatpush.bf16.msra.mxu0 %v478
    %1033 = vmatpush.bf16.msra.mxu0 %v474
    %1034 = vmatpush.bf16.msra.mxu0 %v470
    %1035 = vmatpush.bf16.msra.mxu0 %v466
    %1036 = vmatpush.bf16.msra.mxu0 %v462
    %1037 = vmatpush.bf16.msra.mxu0 %v458
    %1038 = vmatmul.bf16.gmra.mxu0 %v1016
    %v1039 = vpop.f32.mrf.mxu0
    %v1040 = vadd.f32 0.0, %v1039
    %v1041 = vpop.f32.mrf.mxu0
    %1042 = vdwg.mxu0
    %1043 = vmatpush.bf16.msra.mxu0 %v487
    %1044 = vmatpush.bf16.msra.mxu0 %v483
    %1045 = vmatpush.bf16.msra.mxu0 %v479
    %1046 = vmatpush.bf16.msra.mxu0 %v475
    %1047 = vmatpush.bf16.msra.mxu0 %v471
    %1048 = vmatpush.bf16.msra.mxu0 %v467
    %1049 = vmatpush.bf16.msra.mxu0 %v463
    %1050 = vmatpush.bf16.msra.mxu0 %v459
    %1051 = vmatmul.bf16.gmra.mxu0 %v1016
    %v1052 = vpop.f32.mrf.mxu0
    %v1053 = vadd.f32 0.0, %v1052
    %v1054 = vpop.f32.mrf.mxu0
    %1055 = vdwg.mxu0
    %1056 = vmatpush.bf16.msra.mxu0 %v488
    %1057 = vmatpush.bf16.msra.mxu0 %v484
    %1058 = vmatpush.bf16.msra.mxu0 %v480
    %1059 = vmatpush.bf16.msra.mxu0 %v476
    %1060 = vmatpush.bf16.msra.mxu0 %v472
    %1061 = vmatpush.bf16.msra.mxu0 %v468
    %1062 = vmatpush.bf16.msra.mxu0 %v464
    %1063 = vmatpush.bf16.msra.mxu0 %v460
    %1064 = vmatmul.bf16.gmra.mxu0 %v1016
    %v1065 = vpop.f32.mrf.mxu0
    %v1066 = vadd.f32 0.0, %v1065
    %v1067 = vpop.f32.mrf.mxu0
    %1068 = vdwg.mxu0
    %v1069 = vadd.f32 %v1012, %v1027
    %v1070 = vadd.f32 %v1013, %v1040
    %v1071 = vadd.f32 %v1014, %v1053
    %v1072 = vadd.f32 %v1015, %v1066
    %v1073 = vxor.u32 %v1069, 2147483648
    %v1074 = vmul.f32 %v1073, 1.442695
    %v1075 = vpow.pop %v1074
    %v1076 = vadd.f32 %v1075, 1.0
    %v1077 = vrcp.pop %v1076
    %v1078 = vmul.f32 %v1076, %v1077
    %v1079 = vsub.f32 1.0, %v1078
    %v1080 = vmul.f32 %v1077, %v1079
    %v1081 = vadd.f32 %v1077, %v1080
    %vm1082 = vweird.f32 %v1076
    %vm1083 = vweird.f32 %v1077
    %vm1084 = vmor %vm1082, %vm1083
    %v1085 = vsel %vm1084, %v1077, %v1081
    %v1086 = vand.u32 2147483647, %v1076
    %vm1087 = vcmp.eq.f32.partialorder %v1086, 8.507059e+37
    %v1088 = vand.u32 %v1076, 2147483648
    %v1089 = vor.u32 1.1754944e-38, %v1088
    %v1090 = vsel %vm1087, %v1089, %v1085
    %v1091 = vmul.f32 1.0, %v1090
    %v1092 = vxor.u32 %v1070, 2147483648
    %v1093 = vmul.f32 %v1092, 1.442695
    %v1094 = vpow.pop %v1093
    %v1095 = vadd.f32 %v1094, 1.0
    %v1096 = vrcp.pop %v1095
    %v1097 = vmul.f32 %v1095, %v1096
    %v1098 = vsub.f32 1.0, %v1097
    %v1099 = vmul.f32 %v1096, %v1098
    %v1100 = vadd.f32 %v1096, %v1099
    %vm1101 = vweird.f32 %v1095
    %vm1102 = vweird.f32 %v1096
    %vm1103 = vmor %vm1101, %vm1102
    %v1104 = vsel %vm1103, %v1096, %v1100
    %v1105 = vand.u32 2147483647, %v1095
    %vm1106 = vcmp.eq.f32.partialorder %v1105, 8.507059e+37
    %v1107 = vand.u32 %v1095, 2147483648
    %v1108 = vor.u32 1.1754944e-38, %v1107
    %v1109 = vsel %vm1106, %v1108, %v1104
    %v1110 = vmul.f32 1.0, %v1109
    %v1111 = vtanh.pop %v1071
    %v1112 = vxor.u32 %v1072, 2147483648
    %v1113 = vmul.f32 %v1112, 1.442695
    %v1114 = vpow.pop %v1113
    %v1115 = vadd.f32 %v1114, 1.0
    %v1116 = vrcp.pop %v1115
    %v1117 = vmul.f32 %v1115, %v1116
    %v1118 = vsub.f32 1.0, %v1117
    %v1119 = vmul.f32 %v1116, %v1118
    %v1120 = vadd.f32 %v1116, %v1119
    %vm1121 = vweird.f32 %v1115
    %vm1122 = vweird.f32 %v1116
    %vm1123 = vmor %vm1121, %vm1122
    %v1124 = vsel %vm1123, %v1116, %v1120
    %v1125 = vand.u32 2147483647, %v1115
    %vm1126 = vcmp.eq.f32.partialorder %v1125, 8.507059e+37
    %v1127 = vand.u32 %v1115, 2147483648
    %v1128 = vor.u32 1.1754944e-38, %v1127
    %v1129 = vsel %vm1126, %v1128, %v1124
    %v1130 = vmul.f32 1.0, %v1129
    %v1131 = vmul.f32 %v1110, %v1009
    %v1132 = vmul.f32 %v1091, %v1111
    %v1133 = vadd.f32 %v1131, %v1132
    %v1134 = vtanh.pop %v1133
    %v1135 = vmul.f32 %v1130, %v1134
    %v1136 = vld [vmem:[#allocation2 + $0xa0] sm:$0xff]
    %v1137 = vld [vmem:[#allocation2 + $0xa8] sm:$0xff]
    %v1138 = vld [vmem:[#allocation2 + $0xb0] sm:$0xff]
    %v1139 = vld [vmem:[#allocation2 + $0xb8] sm:$0xff]
    %v1140 = vpack.c.bf16 %v1135, %v1135
    %1141 = vmatpush.bf16.msra.mxu0 %v485
    %1142 = vmatpush.bf16.msra.mxu0 %v481
    %1143 = vmatpush.bf16.msra.mxu0 %v477
    %1144 = vmatpush.bf16.msra.mxu0 %v473
    %1145 = vmatpush.bf16.msra.mxu0 %v469
    %1146 = vmatpush.bf16.msra.mxu0 %v465
    %1147 = vmatpush.bf16.msra.mxu0 %v461
    %1148 = vmatpush.bf16.msra.mxu0 %v457
    %1149 = vmatmul.bf16.gmra.mxu0 %v1140
    %v1150 = vpop.f32.mrf.mxu0
    %v1151 = vadd.f32 0.0, %v1150
    %v1152 = vpop.f32.mrf.mxu0
    %1153 = vdwg.mxu0
    %1154 = vmatpush.bf16.msra.mxu0 %v486
    %1155 = vmatpush.bf16.msra.mxu0 %v482
    %1156 = vmatpush.bf16.msra.mxu0 %v478
    %1157 = vmatpush.bf16.msra.mxu0 %v474
    %1158 = vmatpush.bf16.msra.mxu0 %v470
    %1159 = vmatpush.bf16.msra.mxu0 %v466
    %1160 = vmatpush.bf16.msra.mxu0 %v462
    %1161 = vmatpush.bf16.msra.mxu0 %v458
    %1162 = vmatmul.bf16.gmra.mxu0 %v1140
    %v1163 = vpop.f32.mrf.mxu0
    %v1164 = vadd.f32 0.0, %v1163
    %v1165 = vpop.f32.mrf.mxu0
    %1166 = vdwg.mxu0
    %1167 = vmatpush.bf16.msra.mxu0 %v487
    %1168 = vmatpush.bf16.msra.mxu0 %v483
    %1169 = vmatpush.bf16.msra.mxu0 %v479
    %1170 = vmatpush.bf16.msra.mxu0 %v475
    %1171 = vmatpush.bf16.msra.mxu0 %v471
    %1172 = vmatpush.bf16.msra.mxu0 %v467
    %1173 = vmatpush.bf16.msra.mxu0 %v463
    %1174 = vmatpush.bf16.msra.mxu0 %v459
    %1175 = vmatmul.bf16.gmra.mxu0 %v1140
    %v1176 = vpop.f32.mrf.mxu0
    %v1177 = vadd.f32 0.0, %v1176
    %v1178 = vpop.f32.mrf.mxu0
    %1179 = vdwg.mxu0
    %1180 = vmatpush.bf16.msra.mxu0 %v488
    %1181 = vmatpush.bf16.msra.mxu0 %v484
    %1182 = vmatpush.bf16.msra.mxu0 %v480
    %1183 = vmatpush.bf16.msra.mxu0 %v476
    %1184 = vmatpush.bf16.msra.mxu0 %v472
    %1185 = vmatpush.bf16.msra.mxu0 %v468
    %1186 = vmatpush.bf16.msra.mxu0 %v464
    %1187 = vmatpush.bf16.msra.mxu0 %v460
    %1188 = vmatmul.bf16.gmra.mxu0 %v1140
    %v1189 = vpop.f32.mrf.mxu0
    %v1190 = vadd.f32 0.0, %v1189
    %v1191 = vpop.f32.mrf.mxu0
    %1192 = vdwg.mxu0
    %v1193 = vadd.f32 %v1136, %v1151
    %v1194 = vadd.f32 %v1137, %v1164
    %v1195 = vadd.f32 %v1138, %v1177
    %v1196 = vadd.f32 %v1139, %v1190
    %v1197 = vxor.u32 %v1193, 2147483648
    %v1198 = vmul.f32 %v1197, 1.442695
    %v1199 = vpow.pop %v1198
    %v1200 = vadd.f32 %v1199, 1.0
    %v1201 = vrcp.pop %v1200
    %v1202 = vmul.f32 %v1200, %v1201
    %v1203 = vsub.f32 1.0, %v1202
    %v1204 = vmul.f32 %v1201, %v1203
    %v1205 = vadd.f32 %v1201, %v1204
    %vm1206 = vweird.f32 %v1200
    %vm1207 = vweird.f32 %v1201
    %vm1208 = vmor %vm1206, %vm1207
    %v1209 = vsel %vm1208, %v1201, %v1205
    %v1210 = vand.u32 2147483647, %v1200
    %vm1211 = vcmp.eq.f32.partialorder %v1210, 8.507059e+37
    %v1212 = vand.u32 %v1200, 2147483648
    %v1213 = vor.u32 1.1754944e-38, %v1212
    %v1214 = vsel %vm1211, %v1213, %v1209
    %v1215 = vmul.f32 1.0, %v1214
    %v1216 = vxor.u32 %v1194, 2147483648
    %v1217 = vmul.f32 %v1216, 1.442695
    %v1218 = vpow.pop %v1217
    %v1219 = vadd.f32 %v1218, 1.0
    %v1220 = vrcp.pop %v1219
    %v1221 = vmul.f32 %v1219, %v1220
    %v1222 = vsub.f32 1.0, %v1221
    %v1223 = vmul.f32 %v1220, %v1222
    %v1224 = vadd.f32 %v1220, %v1223
    %vm1225 = vweird.f32 %v1219
    %vm1226 = vweird.f32 %v1220
    %vm1227 = vmor %vm1225, %vm1226
    %v1228 = vsel %vm1227, %v1220, %v1224
    %v1229 = vand.u32 2147483647, %v1219
    %vm1230 = vcmp.eq.f32.partialorder %v1229, 8.507059e+37
    %v1231 = vand.u32 %v1219, 2147483648
    %v1232 = vor.u32 1.1754944e-38, %v1231
    %v1233 = vsel %vm1230, %v1232, %v1228
    %v1234 = vmul.f32 1.0, %v1233
    %v1235 = vtanh.pop %v1195
    %v1236 = vxor.u32 %v1196, 2147483648
    %v1237 = vmul.f32 %v1236, 1.442695
    %v1238 = vpow.pop %v1237
    %v1239 = vadd.f32 %v1238, 1.0
    %v1240 = vrcp.pop %v1239
    %v1241 = vmul.f32 %v1239, %v1240
    %v1242 = vsub.f32 1.0, %v1241
    %v1243 = vmul.f32 %v1240, %v1242
    %v1244 = vadd.f32 %v1240, %v1243
    %vm1245 = vweird.f32 %v1239
    %vm1246 = vweird.f32 %v1240
    %vm1247 = vmor %vm1245, %vm1246
    %v1248 = vsel %vm1247, %v1240, %v1244
    %v1249 = vand.u32 2147483647, %v1239
    %vm1250 = vcmp.eq.f32.partialorder %v1249, 8.507059e+37
    %v1251 = vand.u32 %v1239, 2147483648
    %v1252 = vor.u32 1.1754944e-38, %v1251
    %v1253 = vsel %vm1250, %v1252, %v1248
    %v1254 = vmul.f32 1.0, %v1253
    %v1255 = vmul.f32 %v1234, %v1133
    %v1256 = vmul.f32 %v1215, %v1235
    %v1257 = vadd.f32 %v1255, %v1256
    %v1258 = vtanh.pop %v1257
    %v1259 = vmul.f32 %v1254, %v1258
    %v1260 = vld [vmem:[#allocation2 + $0xc0] sm:$0xff]
    %v1261 = vld [vmem:[#allocation2 + $0xc8] sm:$0xff]
    %v1262 = vld [vmem:[#allocation2 + $0xd0] sm:$0xff]
    %v1263 = vld [vmem:[#allocation2 + $0xd8] sm:$0xff]
    %v1264 = vpack.c.bf16 %v1259, %v1259
    %1265 = vmatpush.bf16.msra.mxu0 %v485
    %1266 = vmatpush.bf16.msra.mxu0 %v481
    %1267 = vmatpush.bf16.msra.mxu0 %v477
    %1268 = vmatpush.bf16.msra.mxu0 %v473
    %1269 = vmatpush.bf16.msra.mxu0 %v469
    %1270 = vmatpush.bf16.msra.mxu0 %v465
    %1271 = vmatpush.bf16.msra.mxu0 %v461
    %1272 = vmatpush.bf16.msra.mxu0 %v457
    %1273 = vmatmul.bf16.gmra.mxu0 %v1264
    %v1274 = vpop.f32.mrf.mxu0
    %v1275 = vadd.f32 0.0, %v1274
    %v1276 = vpop.f32.mrf.mxu0
    %1277 = vdwg.mxu0
    %1278 = vmatpush.bf16.msra.mxu0 %v486
    %1279 = vmatpush.bf16.msra.mxu0 %v482
    %1280 = vmatpush.bf16.msra.mxu0 %v478
    %1281 = vmatpush.bf16.msra.mxu0 %v474
    %1282 = vmatpush.bf16.msra.mxu0 %v470
    %1283 = vmatpush.bf16.msra.mxu0 %v466
    %1284 = vmatpush.bf16.msra.mxu0 %v462
    %1285 = vmatpush.bf16.msra.mxu0 %v458
    %1286 = vmatmul.bf16.gmra.mxu0 %v1264
    %v1287 = vpop.f32.mrf.mxu0
    %v1288 = vadd.f32 0.0, %v1287
    %v1289 = vpop.f32.mrf.mxu0
    %1290 = vdwg.mxu0
    %1291 = vmatpush.bf16.msra.mxu0 %v487
    %1292 = vmatpush.bf16.msra.mxu0 %v483
    %1293 = vmatpush.bf16.msra.mxu0 %v479
    %1294 = vmatpush.bf16.msra.mxu0 %v475
    %1295 = vmatpush.bf16.msra.mxu0 %v471
    %1296 = vmatpush.bf16.msra.mxu0 %v467
    %1297 = vmatpush.bf16.msra.mxu0 %v463
    %1298 = vmatpush.bf16.msra.mxu0 %v459
    %1299 = vmatmul.bf16.gmra.mxu0 %v1264
    %v1300 = vpop.f32.mrf.mxu0
    %v1301 = vadd.f32 0.0, %v1300
    %v1302 = vpop.f32.mrf.mxu0
    %1303 = vdwg.mxu0
    %1304 = vmatpush.bf16.msra.mxu0 %v488
    %1305 = vmatpush.bf16.msra.mxu0 %v484
    %1306 = vmatpush.bf16.msra.mxu0 %v480
    %1307 = vmatpush.bf16.msra.mxu0 %v476
    %1308 = vmatpush.bf16.msra.mxu0 %v472
    %1309 = vmatpush.bf16.msra.mxu0 %v468
    %1310 = vmatpush.bf16.msra.mxu0 %v464
    %1311 = vmatpush.bf16.msra.mxu0 %v460
    %1312 = vmatmul.bf16.gmra.mxu0 %v1264
    %v1313 = vpop.f32.mrf.mxu0
    %v1314 = vadd.f32 0.0, %v1313
    %v1315 = vpop.f32.mrf.mxu0
    %1316 = vdwg.mxu0
    %v1317 = vadd.f32 %v1260, %v1275
    %v1318 = vadd.f32 %v1261, %v1288
    %v1319 = vadd.f32 %v1262, %v1301
    %v1320 = vadd.f32 %v1263, %v1314
    %v1321 = vxor.u32 %v1317, 2147483648
    %v1322 = vmul.f32 %v1321, 1.442695
    %v1323 = vpow.pop %v1322
    %v1324 = vadd.f32 %v1323, 1.0
    %v1325 = vrcp.pop %v1324
    %v1326 = vmul.f32 %v1324, %v1325
    %v1327 = vsub.f32 1.0, %v1326
    %v1328 = vmul.f32 %v1325, %v1327
    %v1329 = vadd.f32 %v1325, %v1328
    %vm1330 = vweird.f32 %v1324
    %vm1331 = vweird.f32 %v1325
    %vm1332 = vmor %vm1330, %vm1331
    %v1333 = vsel %vm1332, %v1325, %v1329
    %v1334 = vand.u32 2147483647, %v1324
    %vm1335 = vcmp.eq.f32.partialorder %v1334, 8.507059e+37
    %v1336 = vand.u32 %v1324, 2147483648
    %v1337 = vor.u32 1.1754944e-38, %v1336
    %v1338 = vsel %vm1335, %v1337, %v1333
    %v1339 = vmul.f32 1.0, %v1338
    %v1340 = vxor.u32 %v1318, 2147483648
    %v1341 = vmul.f32 %v1340, 1.442695
    %v1342 = vpow.pop %v1341
    %v1343 = vadd.f32 %v1342, 1.0
    %v1344 = vrcp.pop %v1343
    %v1345 = vmul.f32 %v1343, %v1344
    %v1346 = vsub.f32 1.0, %v1345
    %v1347 = vmul.f32 %v1344, %v1346
    %v1348 = vadd.f32 %v1344, %v1347
    %vm1349 = vweird.f32 %v1343
    %vm1350 = vweird.f32 %v1344
    %vm1351 = vmor %vm1349, %vm1350
    %v1352 = vsel %vm1351, %v1344, %v1348
    %v1353 = vand.u32 2147483647, %v1343
    %vm1354 = vcmp.eq.f32.partialorder %v1353, 8.507059e+37
    %v1355 = vand.u32 %v1343, 2147483648
    %v1356 = vor.u32 1.1754944e-38, %v1355
    %v1357 = vsel %vm1354, %v1356, %v1352
    %v1358 = vmul.f32 1.0, %v1357
    %v1359 = vtanh.pop %v1319
    %v1360 = vxor.u32 %v1320, 2147483648
    %v1361 = vmul.f32 %v1360, 1.442695
    %v1362 = vpow.pop %v1361
    %v1363 = vadd.f32 %v1362, 1.0
    %v1364 = vrcp.pop %v1363
    %v1365 = vmul.f32 %v1363, %v1364
    %v1366 = vsub.f32 1.0, %v1365
    %v1367 = vmul.f32 %v1364, %v1366
    %v1368 = vadd.f32 %v1364, %v1367
    %vm1369 = vweird.f32 %v1363
    %vm1370 = vweird.f32 %v1364
    %vm1371 = vmor %vm1369, %vm1370
    %v1372 = vsel %vm1371, %v1364, %v1368
    %v1373 = vand.u32 2147483647, %v1363
    %vm1374 = vcmp.eq.f32.partialorder %v1373, 8.507059e+37
    %v1375 = vand.u32 %v1363, 2147483648
    %v1376 = vor.u32 1.1754944e-38, %v1375
    %v1377 = vsel %vm1374, %v1376, %v1372
    %v1378 = vmul.f32 1.0, %v1377
    %v1379 = vmul.f32 %v1358, %v1257
    %v1380 = vmul.f32 %v1339, %v1359
    %v1381 = vadd.f32 %v1379, %v1380
    %v1382 = vtanh.pop %v1381
    %v1383 = vmul.f32 %v1378, %v1382
    %v1384 = vld [vmem:[#allocation2 + $0xe0] sm:$0xff]
    %v1385 = vld [vmem:[#allocation2 + $0xe8] sm:$0xff]
    %v1386 = vld [vmem:[#allocation2 + $0xf0] sm:$0xff]
    %v1387 = vld [vmem:[#allocation2 + $0xf8] sm:$0xff]
    %v1388 = vpack.c.bf16 %v1383, %v1383
    %1389 = vmatpush.bf16.msra.mxu0 %v485
    %1390 = vmatpush.bf16.msra.mxu0 %v481
    %1391 = vmatpush.bf16.msra.mxu0 %v477
    %1392 = vmatpush.bf16.msra.mxu0 %v473
    %1393 = vmatpush.bf16.msra.mxu0 %v469
    %1394 = vmatpush.bf16.msra.mxu0 %v465
    %1395 = vmatpush.bf16.msra.mxu0 %v461
    %1396 = vmatpush.bf16.msra.mxu0 %v457
    %1397 = vmatmul.bf16.gmra.mxu0 %v1388
    %v1398 = vpop.f32.mrf.mxu0
    %v1399 = vadd.f32 0.0, %v1398
    %v1400 = vpop.f32.mrf.mxu0
    %1401 = vdwg.mxu0
    %1402 = vmatpush.bf16.msra.mxu0 %v486
    %1403 = vmatpush.bf16.msra.mxu0 %v482
    %1404 = vmatpush.bf16.msra.mxu0 %v478
    %1405 = vmatpush.bf16.msra.mxu0 %v474
    %1406 = vmatpush.bf16.msra.mxu0 %v470
    %1407 = vmatpush.bf16.msra.mxu0 %v466
    %1408 = vmatpush.bf16.msra.mxu0 %v462
    %1409 = vmatpush.bf16.msra.mxu0 %v458
    %1410 = vmatmul.bf16.gmra.mxu0 %v1388
    %v1411 = vpop.f32.mrf.mxu0
    %v1412 = vadd.f32 0.0, %v1411
    %v1413 = vpop.f32.mrf.mxu0
    %1414 = vdwg.mxu0
    %1415 = vmatpush.bf16.msra.mxu0 %v487
    %1416 = vmatpush.bf16.msra.mxu0 %v483
    %1417 = vmatpush.bf16.msra.mxu0 %v479
    %1418 = vmatpush.bf16.msra.mxu0 %v475
    %1419 = vmatpush.bf16.msra.mxu0 %v471
    %1420 = vmatpush.bf16.msra.mxu0 %v467
    %1421 = vmatpush.bf16.msra.mxu0 %v463
    %1422 = vmatpush.bf16.msra.mxu0 %v459
    %1423 = vmatmul.bf16.gmra.mxu0 %v1388
    %v1424 = vpop.f32.mrf.mxu0
    %v1425 = vadd.f32 0.0, %v1424
    %v1426 = vpop.f32.mrf.mxu0
    %1427 = vdwg.mxu0
    %1428 = vmatpush.bf16.msra.mxu0 %v488
    %1429 = vmatpush.bf16.msra.mxu0 %v484
    %1430 = vmatpush.bf16.msra.mxu0 %v480
    %1431 = vmatpush.bf16.msra.mxu0 %v476
    %1432 = vmatpush.bf16.msra.mxu0 %v472
    %1433 = vmatpush.bf16.msra.mxu0 %v468
    %1434 = vmatpush.bf16.msra.mxu0 %v464
    %1435 = vmatpush.bf16.msra.mxu0 %v460
    %1436 = vmatmul.bf16.gmra.mxu0 %v1388
    %v1437 = vpop.f32.mrf.mxu0
    %v1438 = vadd.f32 0.0, %v1437
    %v1439 = vpop.f32.mrf.mxu0
    %1440 = vdwg.mxu0
    %v1441 = vadd.f32 %v1384, %v1399
    %v1442 = vadd.f32 %v1385, %v1412
    %v1443 = vadd.f32 %v1386, %v1425
    %v1444 = vadd.f32 %v1387, %v1438
    %v1445 = vxor.u32 %v1441, 2147483648
    %v1446 = vmul.f32 %v1445, 1.442695
    %v1447 = vpow.pop %v1446
    %v1448 = vadd.f32 %v1447, 1.0
    %v1449 = vrcp.pop %v1448
    %v1450 = vmul.f32 %v1448, %v1449
    %v1451 = vsub.f32 1.0, %v1450
    %v1452 = vmul.f32 %v1449, %v1451
    %v1453 = vadd.f32 %v1449, %v1452
    %vm1454 = vweird.f32 %v1448
    %vm1455 = vweird.f32 %v1449
    %vm1456 = vmor %vm1454, %vm1455
    %v1457 = vsel %vm1456, %v1449, %v1453
    %v1458 = vand.u32 2147483647, %v1448
    %vm1459 = vcmp.eq.f32.partialorder %v1458, 8.507059e+37
    %v1460 = vand.u32 %v1448, 2147483648
    %v1461 = vor.u32 1.1754944e-38, %v1460
    %v1462 = vsel %vm1459, %v1461, %v1457
    %v1463 = vmul.f32 1.0, %v1462
    %v1464 = vxor.u32 %v1442, 2147483648
    %v1465 = vmul.f32 %v1464, 1.442695
    %v1466 = vpow.pop %v1465
    %v1467 = vadd.f32 %v1466, 1.0
    %v1468 = vrcp.pop %v1467
    %v1469 = vmul.f32 %v1467, %v1468
    %v1470 = vsub.f32 1.0, %v1469
    %v1471 = vmul.f32 %v1468, %v1470
    %v1472 = vadd.f32 %v1468, %v1471
    %vm1473 = vweird.f32 %v1467
    %vm1474 = vweird.f32 %v1468
    %vm1475 = vmor %vm1473, %vm1474
    %v1476 = vsel %vm1475, %v1468, %v1472
    %v1477 = vand.u32 2147483647, %v1467
    %vm1478 = vcmp.eq.f32.partialorder %v1477, 8.507059e+37
    %v1479 = vand.u32 %v1467, 2147483648
    %v1480 = vor.u32 1.1754944e-38, %v1479
    %v1481 = vsel %vm1478, %v1480, %v1476
    %v1482 = vmul.f32 1.0, %v1481
    %v1483 = vtanh.pop %v1443
    %v1484 = vxor.u32 %v1444, 2147483648
    %v1485 = vmul.f32 %v1484, 1.442695
    %v1486 = vpow.pop %v1485
    %v1487 = vadd.f32 %v1486, 1.0
    %v1488 = vrcp.pop %v1487
    %v1489 = vmul.f32 %v1487, %v1488
    %v1490 = vsub.f32 1.0, %v1489
    %v1491 = vmul.f32 %v1488, %v1490
    %v1492 = vadd.f32 %v1488, %v1491
    %vm1493 = vweird.f32 %v1487
    %vm1494 = vweird.f32 %v1488
    %vm1495 = vmor %vm1493, %vm1494
    %v1496 = vsel %vm1495, %v1488, %v1492
    %v1497 = vand.u32 2147483647, %v1487
    %vm1498 = vcmp.eq.f32.partialorder %v1497, 8.507059e+37
    %v1499 = vand.u32 %v1487, 2147483648
    %v1500 = vor.u32 1.1754944e-38, %v1499
    %v1501 = vsel %vm1498, %v1500, %v1496
    %v1502 = vmul.f32 1.0, %v1501
    %v1503 = vmul.f32 %v1482, %v1381
    %v1504 = vmul.f32 %v1463, %v1483
    %v1505 = vadd.f32 %v1503, %v1504
    %v1506 = vtanh.pop %v1505
    %v1507 = vmul.f32 %v1502, %v1506
    %v1508 = vmax.f32 %v1507, 0.0
    %v1509 = vpack.c.bf16 %v1508, %v1508
    %v1510 = vld [vmem:[#allocation9] sm:$0xf]
    %v1511 = vld [vmem:[#allocation9 + $0x4] sm:$0xf]
    %v1512 = vld [vmem:[#allocation9 + $0x8] sm:$0xf]
    %v1513 = vld [vmem:[#allocation9 + $0xc] sm:$0xf]
    %v1514 = vld [vmem:[#allocation9 + $0x10] sm:$0xf]
    %v1515 = vld [vmem:[#allocation9 + $0x14] sm:$0xf]
    %v1516 = vld [vmem:[#allocation9 + $0x18] sm:$0xf]
    %v1517 = vld [vmem:[#allocation9 + $0x1c] sm:$0xf]
    %v1518 = vld [vmem:[#allocation9 + $0x20] sm:$0xf]
    %v1519 = vld [vmem:[#allocation9 + $0x24] sm:$0xf]
    %v1520 = vld [vmem:[#allocation9 + $0x28] sm:$0xf]
    %v1521 = vld [vmem:[#allocation9 + $0x2c] sm:$0xf]
    %v1522 = vld [vmem:[#allocation9 + $0x30] sm:$0xf]
    %v1523 = vld [vmem:[#allocation9 + $0x34] sm:$0xf]
    %v1524 = vld [vmem:[#allocation9 + $0x38] sm:$0xf]
    %v1525 = vld [vmem:[#allocation9 + $0x3c] sm:$0xf]
    %v1526 = vld [vmem:[%s6] sm:$0x1]
    %v1528 = vperm.slane %v1526, 0
    %v1546 = vunpack.c.l.b16 %v1510
    %v1547 = vunpack.c.l.b16 %v1511
    %v1548 = vunpack.c.l.b16 %v1512
    %v1549 = vunpack.c.l.b16 %v1513
    %v1550 = vunpack.c.l.b16 %v1514
    %v1551 = vunpack.c.l.b16 %v1515
    %v1552 = vunpack.c.l.b16 %v1516
    %v1553 = vunpack.c.l.b16 %v1517
    %v1554 = vunpack.c.l.b16 %v1518
    %v1555 = vunpack.c.l.b16 %v1519
    %v1556 = vunpack.c.l.b16 %v1520
    %v1557 = vunpack.c.l.b16 %v1521
    %v1558 = vunpack.c.l.b16 %v1522
    %v1559 = vunpack.c.l.b16 %v1523
    %v1560 = vunpack.c.l.b16 %v1524
    %v1561 = vunpack.c.l.b16 %v1525
    %v1562 = vpack.c.b16 %v1547, %v1546
    %v1563 = vpack.c.b16 %v1549, %v1548
    %v1564 = vpack.c.b16 %v1551, %v1550
    %v1565 = vpack.c.b16 %v1553, %v1552
    %v1566 = vpack.c.b16 %v1555, %v1554
    %v1567 = vpack.c.b16 %v1557, %v1556
    %v1568 = vpack.c.b16 %v1559, %v1558
    %v1569 = vpack.c.b16 %v1561, %v1560
    %1578 = vmatpush.bf16.msra.mxu0 %v1569
    %1579 = vmatpush.bf16.msra.mxu0 %v1568
    %1580 = vmatpush.bf16.msra.mxu0 %v1567
    %1581 = vmatpush.bf16.msra.mxu0 %v1566
    %1582 = vmatpush.bf16.msra.mxu0 %v1565
    %1583 = vmatpush.bf16.msra.mxu0 %v1564
    %1584 = vmatpush.bf16.msra.mxu0 %v1563
    %1585 = vmatpush.bf16.msra.mxu0 %v1562
    %1586 = vmatmul.bf16.gmra.mxu0 %v1509
    %v1587 = vpop.f32.mrf.mxu0
    %v1588 = vadd.f32 %v1528, %v1587
    %v1589 = vpop.f32.mrf.mxu0
    %1590 = vdwg.mxu0
    %1591 = vst [vmem:[%s7] sm:$0xff] %v1588
    // Predicated region
    $region38: #{lstm_classifier_forward.1} parent=1 // pred_check
      _
    $region39: #{lstm_classifier_forward.1} parent=1 // pred_check_branch
      %1593 = sbr.rel (0) target = $region41
    $region40: #{lstm_classifier_forward.1} parent=1 // pred_region
      _
    $region41: #{lstm_classifier_forward.1} parent=1 // pred_fallthru
      _
    // Predicated region
    $region42: #{lstm_classifier_forward.1} parent=1 // pred_check
      _
    $region43: #{lstm_classifier_forward.1} parent=1 // pred_check_branch
      %1595 = sbr.rel (0) target = $region45
    $region44: #{lstm_classifier_forward.1} parent=1 // pred_region
      _
    $region45: #{lstm_classifier_forward.1} parent=1 // pred_fallthru
      _
    %1596 = vsyncpa [#allocation6], 1
    %1597 = vsyncpa [#allocation8], 1

</llo_original>
